<compile_context>
chip_gen: v5e
topology: v5e:2x2
jax: 0.10.0
libtpu: 0.0.40
codegen_flags: <defaults>
</compile_context>

<pallas_src>
import functools

import jax
import jax.numpy as jnp
from jax import lax
from jax.experimental import pallas as pl
from jax.experimental.pallas import tpu as pltpu


# ---------------------------------------------------------------------------
# Fused kernel
# ---------------------------------------------------------------------------
def _make_fused_kernel(num_layers, T, Bp, H):
    """Build the fused (all layers + FC) kernel for a static config."""
    G = 4 * H

    def kernel(*refs):
        # refs layout:
        #   refs[0]                      : x_flat      (T*Bp, I)       input
        #   refs[1+3l .. 3+3l]           : w_ih_t (in,G), w_hh_t (H,G), b (1,G)
        #   refs[1+3L], refs[2+3L]       : fc_w_t (H,F), fc_b (1,F)
        #   refs[3+3L]                   : o_ref (Bp, F)                output
        #   refs[4+3L]                   : hseq scratch (T*Bp, H)       VMEM
        #   refs[5+3L]                   : gx   scratch (T*Bp, G)       VMEM
        x_ref = refs[0]
        fc_w_ref = refs[1 + 3 * num_layers]
        fc_b_ref = refs[2 + 3 * num_layers]
        o_ref = refs[3 + 3 * num_layers]
        hseq_ref = refs[4 + 3 * num_layers]
        gx_ref = refs[5 + 3 * num_layers]

        h_last = jnp.zeros((Bp, H), jnp.float32)

        for layer in range(num_layers):                # static Python loop
            wi_ref = refs[1 + 3 * layer]               # (in_dim, 4H)
            wh_ref = refs[2 + 3 * layer]               # (H, 4H)
            b_ref = refs[3 + 3 * layer]                # (1, 4H)

            # ---- hoisted input projection: one big matmul per layer ----
            inp = x_ref[...] if layer == 0 else hseq_ref[...]   # (T*Bp, in)
            gx_ref[...] = (
                jnp.dot(inp, wi_ref[...], preferred_element_type=jnp.float32)
                + b_ref[...]
            )

            wh = wh_ref[...]                            # loop-invariant (H, 4H)
            is_last = layer == num_layers - 1

            # ---- serial recurrence over time (fully unrolled) ----
            def step(t, carry, wh=wh, is_last=is_last):
                h_prev, c_prev = carry
                row = pl.multiple_of(t * Bp, Bp)
                gates = gx_ref[pl.ds(row, Bp), :] + jnp.dot(
                    h_prev, wh, preferred_element_type=jnp.float32)  # (Bp, 4H)

                # sigmoid(x) = 0.5*(tanh(0.5x)+1): 2 EUP ops on the full vreg.
                sig = 0.5 * (jnp.tanh(0.5 * gates) + 1.0)
                th = jnp.tanh(gates)

                i_g = sig[:, 0 * H:1 * H]               # input gate
                f_g = sig[:, 1 * H:2 * H]               # forget gate
                g_g = th[:, 2 * H:3 * H]                # cell candidate
                o_g = sig[:, 3 * H:4 * H]               # output gate

                c_new = f_g * c_prev + i_g * g_g
                h_new = o_g * jnp.tanh(c_new)
                if not is_last:
                    # sequence only needed as input to the next layer
                    hseq_ref[pl.ds(row, Bp), :] = h_new
                return h_new, c_new

            zeros = jnp.zeros((Bp, H), jnp.float32)
            h_last, _ = lax.fori_loop(0, T, step, (zeros, zeros), unroll=True)

        # ---- FC head on the last hidden state of the last layer ----
        o_ref[...] = (
            jnp.dot(h_last, fc_w_ref[...], preferred_element_type=jnp.float32)
            + fc_b_ref[...]
        ).astype(o_ref.dtype)

    return kernel


# ---------------------------------------------------------------------------
# Wrapper
# ---------------------------------------------------------------------------
@functools.partial(jax.jit, static_argnames=("forecast_steps",))
def lstm_ecf_forward(x_bti, params, forecast_steps=1):
    """Forward pass of LSTM_ECF.  x_bti: (B, T, I) float32 (batch_first)."""
    x = x_bti.astype(jnp.float32)
    B, T, I = x.shape
    Bp = ((B + 7) // 8) * 8                       # pad batch to sublane width

    # time-major, batch-padded, flattened to (T*Bp, I) for the hoisted matmul
    x_t = jnp.transpose(x, (1, 0, 2))             # (T, B, I)
    x_t = jnp.pad(x_t, ((0, 0), (0, Bp - B), (0, 0)))
    x_flat = x_t.reshape(T * Bp, I)

    layers = params["lstm"]
    L = len(layers)
    H = layers[0]["w_hh_t"].shape[0]
    G = 4 * H
    F = params["fc_w_t"].shape[1]

    flat_args = [x_flat]
    for lyr in layers:
        flat_args += [lyr["w_ih_t"], lyr["w_hh_t"], lyr["b"]]
    flat_args += [params["fc_w_t"], params["fc_b"]]

    out_p = pl.pallas_call(
        _make_fused_kernel(L, T, Bp, H),
        out_shape=jax.ShapeDtypeStruct((Bp, F), jnp.float32),
        scratch_shapes=[
            pltpu.VMEM((T * Bp, H), jnp.float32),   # inter-layer h sequence
            pltpu.VMEM((T * Bp, G), jnp.float32),   # hoisted input projection
        ],
    )(*flat_args)

    out = out_p[:B]                               # drop batch padding
    if forecast_steps == 1:
        return jnp.squeeze(out, axis=-1)          # (B,)
    return out


# ---------------------------------------------------------------------------
# Pure-JAX reference (for in-script correctness check)
# ---------------------------------------------------------------------------
def _lstm_ecf_reference(x_bti, params, forecast_steps):
    x = jnp.transpose(x_bti, (1, 0, 2)).astype(jnp.float32)   # (T, B, I)
    h_seq = x
    for lyr in params["lstm"]:
        H = lyr["w_hh_t"].shape[0]
        B = h_seq.shape[1]

        def step(carry, x_t, wi=lyr["w_ih_t"], wh=lyr["w_hh_t"], b=lyr["b"],
                 H=H):
            h, c = carry
            gates = x_t @ wi + h @ wh + b
            i = jax.nn.sigmoid(gates[:, 0 * H:1 * H])
            f = jax.nn.sigmoid(gates[:, 1 * H:2 * H])
            g = jnp.tanh(gates[:, 2 * H:3 * H])
            o = jax.nn.sigmoid(gates[:, 3 * H:4 * H])
            c = f * c + i * g
            h = o * jnp.tanh(c)
            return (h, c), h

        init = (jnp.zeros((B, H), jnp.float32), jnp.zeros((B, H), jnp.float32))
        _, h_seq = lax.scan(step, init, h_seq)
    out = h_seq[-1] @ params["fc_w_t"] + params["fc_b"]
    if forecast_steps == 1:
        return out.squeeze(-1)
    return out


# ---------------------------------------------------------------------------
# Deterministic parameter init (PyTorch-style U(-1/sqrt(H), 1/sqrt(H)))
# ---------------------------------------------------------------------------
def init_params(key, input_size, hidden_size, num_layers, forecast_steps):
    bound = 1.0 / jnp.sqrt(jnp.float32(hidden_size))
    params = {"lstm": []}
    for layer in range(num_layers):
        in_dim = input_size if layer == 0 else hidden_size
        key, k1, k2, k3, k4 = jax.random.split(key, 5)
        # PyTorch stores W_ih: (4H, I), W_hh: (4H, H); kept transposed here
        # for the (rows, in) @ (in, 4H) matmul layout inside the kernel.
        w_ih_t = jax.random.uniform(k1, (in_dim, 4 * hidden_size),
                                    jnp.float32, -bound, bound)
        w_hh_t = jax.random.uniform(k2, (hidden_size, 4 * hidden_size),
                                    jnp.float32, -bound, bound)
        b_ih = jax.random.uniform(k3, (4 * hidden_size,),
                                  jnp.float32, -bound, bound)
        b_hh = jax.random.uniform(k4, (4 * hidden_size,),
                                  jnp.float32, -bound, bound)
        params["lstm"].append({
            "w_ih_t": w_ih_t,
            "w_hh_t": w_hh_t,
            "b": (b_ih + b_hh).reshape(1, 4 * hidden_size),
        })
    key, k5, k6 = jax.random.split(key, 3)
    fc_bound = 1.0 / jnp.sqrt(jnp.float32(hidden_size))
    params["fc_w_t"] = jax.random.uniform(k5, (hidden_size, forecast_steps),
                                          jnp.float32, -fc_bound, fc_bound)
    params["fc_b"] = jax.random.uniform(k6, (1, forecast_steps),
                                        jnp.float32, -fc_bound, fc_bound)
    return params


# ---------------------------------------------------------------------------
if __name__ == "__main__":
    # Small shapes consistent with the module: x is (batch, seq, input_size)
    batch, seq, input_size = 2, 8, 8
    hidden_size, num_layers, forecast_steps = 32, 2, 1

    key = jax.random.PRNGKey(0)
    key, kx = jax.random.split(key)
    x = jax.random.normal(kx, (batch, seq, input_size), jnp.float32)

    params = init_params(key, input_size, hidden_size, num_layers,
                         forecast_steps)

    out = lstm_ecf_forward(x, params, forecast_steps=forecast_steps)
    out = jax.block_until_ready(out)

    assert out.shape == (batch,), out.shape
    assert bool(jnp.all(jnp.isfinite(out)))

    ref = _lstm_ecf_reference(x, params, forecast_steps)
    assert bool(jnp.allclose(out, ref, rtol=2e-3, atol=2e-3)), (out, ref)

    print("KERNEL_OK")
</pallas_src>

<mosaic_0001>
module attributes {stable_mosaic.version = 11 : i64} {
  func.func @kernel(%arg0: memref<64x8xf32, #tpu.memory_space<vmem>>, %arg1: memref<8x128xf32, #tpu.memory_space<vmem>>, %arg2: memref<32x128xf32, #tpu.memory_space<vmem>>, %arg3: memref<1x128xf32, #tpu.memory_space<vmem>>, %arg4: memref<32x128xf32, #tpu.memory_space<vmem>>, %arg5: memref<32x128xf32, #tpu.memory_space<vmem>>, %arg6: memref<1x128xf32, #tpu.memory_space<vmem>>, %arg7: memref<32x1xf32, #tpu.memory_space<vmem>>, %arg8: memref<1x1xf32, #tpu.memory_space<vmem>>, %arg9: memref<8x1xf32, #tpu.memory_space<vmem>>, %arg10: memref<64x32xf32, #tpu.memory_space<vmem>>, %arg11: memref<64x128xf32, #tpu.memory_space<vmem>>) attributes {dimension_semantics = [], scalar_prefetch = 0 : i64, scratch_operands = 2 : i64, tpu.core_type = #tpu.core_type<tc>} {
    %c0 = arith.constant 0 : index
    %c0_0 = arith.constant 0 : index
    %0 = vector.load %arg0[%c0, %c0_0] : memref<64x8xf32, #tpu.memory_space<vmem>>, vector<64x8xf32>
    %c0_1 = arith.constant 0 : index
    %c0_2 = arith.constant 0 : index
    %1 = vector.load %arg1[%c0_1, %c0_2] : memref<8x128xf32, #tpu.memory_space<vmem>>, vector<8x128xf32>
    %cst = arith.constant dense<0.000000e+00> : vector<64x128xf32>
    %2 = tpu.matmul %0, %1, %cst {dimension_numbers = #tpu.dot_dimension_numbers<[1], [0], [0], [1], [0, 0, 1, 1], [], []>} : vector<64x8xf32>, vector<8x128xf32>, vector<64x128xf32> -> vector<64x128xf32>
    %c0_3 = arith.constant 0 : index
    %c0_4 = arith.constant 0 : index
    %3 = vector.load %arg3[%c0_3, %c0_4] : memref<1x128xf32, #tpu.memory_space<vmem>>, vector<1x128xf32>
    %4 = vector.broadcast %3 : vector<1x128xf32> to vector<64x128xf32>
    %5 = arith.addf %2, %4 : vector<64x128xf32>
    %c0_5 = arith.constant 0 : index
    %c0_6 = arith.constant 0 : index
    %6 = vector.load %arg11[%c0_5, %c0_6] : memref<64x128xf32, #tpu.memory_space<vmem>>, vector<64x128xf32>
    tpu.vector_store %arg11[%c0_5, %c0_6], %5 {strides = array<i32>} : memref<64x128xf32, #tpu.memory_space<vmem>>, vector<64x128xf32>,
    %c0_7 = arith.constant 0 : index
    %c0_8 = arith.constant 0 : index
    %7 = vector.load %arg2[%c0_7, %c0_8] : memref<32x128xf32, #tpu.memory_space<vmem>>, vector<32x128xf32>
    %cst_9 = arith.constant 0.000000e+00 : f32
    %8 = vector.broadcast %cst_9 : f32 to vector<8x32xf32>
    %c0_i32 = arith.constant 0 : i32
    %c8_i32 = arith.constant 8 : i32
    %9 = arith.muli %c0_i32, %c8_i32 : i32
    %10 = tpu.assume_multiple %9, 8 : i32
    %11 = arith.index_cast %10 : i32 to index
    %c0_10 = arith.constant 0 : index
    %12 = vector.load %arg11[%11, %c0_10] : memref<64x128xf32, #tpu.memory_space<vmem>>, vector<8x128xf32>
    %cst_11 = arith.constant dense<0.000000e+00> : vector<8x128xf32>
    %13 = tpu.matmul %8, %7, %cst_11 {dimension_numbers = #tpu.dot_dimension_numbers<[1], [0], [0], [1], [0, 0, 1, 1], [], []>} : vector<8x32xf32>, vector<32x128xf32>, vector<8x128xf32> -> vector<8x128xf32>
    %14 = arith.addf %12, %13 : vector<8x128xf32>
    %cst_12 = arith.constant 5.000000e-01 : f32
    %15 = vector.broadcast %cst_12 : f32 to vector<8x128xf32>
    %16 = arith.mulf %15, %14 : vector<8x128xf32>
    %17 = math.tanh %16 : vector<8x128xf32>
    %cst_13 = arith.constant 1.000000e+00 : f32
    %18 = vector.broadcast %cst_13 : f32 to vector<8x128xf32>
    %19 = arith.addf %17, %18 : vector<8x128xf32>
    %cst_14 = arith.constant 5.000000e-01 : f32
    %20 = vector.broadcast %cst_14 : f32 to vector<8x128xf32>
    %21 = arith.mulf %20, %19 : vector<8x128xf32>
    %22 = math.tanh %14 : vector<8x128xf32>
    %23 = vector.extract_strided_slice %21 {offsets = [0, 0], sizes = [8, 32], strides = [1, 1]} : vector<8x128xf32> to vector<8x32xf32>
    %24 = vector.extract_strided_slice %21 {offsets = [0, 32], sizes = [8, 32], strides = [1, 1]} : vector<8x128xf32> to vector<8x32xf32>
    %25 = vector.extract_strided_slice %22 {offsets = [0, 64], sizes = [8, 32], strides = [1, 1]} : vector<8x128xf32> to vector<8x32xf32>
    %26 = vector.extract_strided_slice %21 {offsets = [0, 96], sizes = [8, 32], strides = [1, 1]} : vector<8x128xf32> to vector<8x32xf32>
    %27 = arith.mulf %24, %8 : vector<8x32xf32>
    %28 = arith.mulf %23, %25 : vector<8x32xf32>
    %29 = arith.addf %27, %28 : vector<8x32xf32>
    %30 = math.tanh %29 : vector<8x32xf32>
    %31 = arith.mulf %26, %30 : vector<8x32xf32>
    %32 = arith.index_cast %10 : i32 to index
    %c0_15 = arith.constant 0 : index
    %33 = vector.load %arg10[%32, %c0_15] : memref<64x32xf32, #tpu.memory_space<vmem>>, vector<8x32xf32>
    tpu.vector_store %arg10[%32, %c0_15], %31 {strides = array<i32>} : memref<64x32xf32, #tpu.memory_space<vmem>>, vector<8x32xf32>,
    %c1_i32 = arith.constant 1 : i32
    %c8_i32_16 = arith.constant 8 : i32
    %34 = arith.muli %c1_i32, %c8_i32_16 : i32
    %35 = tpu.assume_multiple %34, 8 : i32
    %36 = arith.index_cast %35 : i32 to index
    %c0_17 = arith.constant 0 : index
    %37 = vector.load %arg11[%36, %c0_17] : memref<64x128xf32, #tpu.memory_space<vmem>>, vector<8x128xf32>
    %cst_18 = arith.constant dense<0.000000e+00> : vector<8x128xf32>
    %38 = tpu.matmul %31, %7, %cst_18 {dimension_numbers = #tpu.dot_dimension_numbers<[1], [0], [0], [1], [0, 0, 1, 1], [], []>} : vector<8x32xf32>, vector<32x128xf32>, vector<8x128xf32> -> vector<8x128xf32>
    %39 = arith.addf %37, %38 : vector<8x128xf32>
    %cst_19 = arith.constant 5.000000e-01 : f32
    %40 = vector.broadcast %cst_19 : f32 to vector<8x128xf32>
    %41 = arith.mulf %40, %39 : vector<8x128xf32>
    %42 = math.tanh %41 : vector<8x128xf32>
    %cst_20 = arith.constant 1.000000e+00 : f32
    %43 = vector.broadcast %cst_20 : f32 to vector<8x128xf32>
    %44 = arith.addf %42, %43 : vector<8x128xf32>
    %cst_21 = arith.constant 5.000000e-01 : f32
    %45 = vector.broadcast %cst_21 : f32 to vector<8x128xf32>
    %46 = arith.mulf %45, %44 : vector<8x128xf32>
    %47 = math.tanh %39 : vector<8x128xf32>
    %48 = vector.extract_strided_slice %46 {offsets = [0, 0], sizes = [8, 32], strides = [1, 1]} : vector<8x128xf32> to vector<8x32xf32>
    %49 = vector.extract_strided_slice %46 {offsets = [0, 32], sizes = [8, 32], strides = [1, 1]} : vector<8x128xf32> to vector<8x32xf32>
    %50 = vector.extract_strided_slice %47 {offsets = [0, 64], sizes = [8, 32], strides = [1, 1]} : vector<8x128xf32> to vector<8x32xf32>
    %51 = vector.extract_strided_slice %46 {offsets = [0, 96], sizes = [8, 32], strides = [1, 1]} : vector<8x128xf32> to vector<8x32xf32>
    %52 = arith.mulf %49, %29 : vector<8x32xf32>
    %53 = arith.mulf %48, %50 : vector<8x32xf32>
    %54 = arith.addf %52, %53 : vector<8x32xf32>
    %55 = math.tanh %54 : vector<8x32xf32>
    %56 = arith.mulf %51, %55 : vector<8x32xf32>
    %57 = arith.index_cast %35 : i32 to index
    %c0_22 = arith.constant 0 : index
    %58 = vector.load %arg10[%57, %c0_22] : memref<64x32xf32, #tpu.memory_space<vmem>>, vector<8x32xf32>
    tpu.vector_store %arg10[%57, %c0_22], %56 {strides = array<i32>} : memref<64x32xf32, #tpu.memory_space<vmem>>, vector<8x32xf32>,
    %c2_i32 = arith.constant 2 : i32
    %c8_i32_23 = arith.constant 8 : i32
    %59 = arith.muli %c2_i32, %c8_i32_23 : i32
    %60 = tpu.assume_multiple %59, 8 : i32
    %61 = arith.index_cast %60 : i32 to index
    %c0_24 = arith.constant 0 : index
    %62 = vector.load %arg11[%61, %c0_24] : memref<64x128xf32, #tpu.memory_space<vmem>>, vector<8x128xf32>
    %cst_25 = arith.constant dense<0.000000e+00> : vector<8x128xf32>
    %63 = tpu.matmul %56, %7, %cst_25 {dimension_numbers = #tpu.dot_dimension_numbers<[1], [0], [0], [1], [0, 0, 1, 1], [], []>} : vector<8x32xf32>, vector<32x128xf32>, vector<8x128xf32> -> vector<8x128xf32>
    %64 = arith.addf %62, %63 : vector<8x128xf32>
    %cst_26 = arith.constant 5.000000e-01 : f32
    %65 = vector.broadcast %cst_26 : f32 to vector<8x128xf32>
    %66 = arith.mulf %65, %64 : vector<8x128xf32>
    %67 = math.tanh %66 : vector<8x128xf32>
    %cst_27 = arith.constant 1.000000e+00 : f32
    %68 = vector.broadcast %cst_27 : f32 to vector<8x128xf32>
    %69 = arith.addf %67, %68 : vector<8x128xf32>
    %cst_28 = arith.constant 5.000000e-01 : f32
    %70 = vector.broadcast %cst_28 : f32 to vector<8x128xf32>
    %71 = arith.mulf %70, %69 : vector<8x128xf32>
    %72 = math.tanh %64 : vector<8x128xf32>
    %73 = vector.extract_strided_slice %71 {offsets = [0, 0], sizes = [8, 32], strides = [1, 1]} : vector<8x128xf32> to vector<8x32xf32>
    %74 = vector.extract_strided_slice %71 {offsets = [0, 32], sizes = [8, 32], strides = [1, 1]} : vector<8x128xf32> to vector<8x32xf32>
    %75 = vector.extract_strided_slice %72 {offsets = [0, 64], sizes = [8, 32], strides = [1, 1]} : vector<8x128xf32> to vector<8x32xf32>
    %76 = vector.extract_strided_slice %71 {offsets = [0, 96], sizes = [8, 32], strides = [1, 1]} : vector<8x128xf32> to vector<8x32xf32>
    %77 = arith.mulf %74, %54 : vector<8x32xf32>
    %78 = arith.mulf %73, %75 : vector<8x32xf32>
    %79 = arith.addf %77, %78 : vector<8x32xf32>
    %80 = math.tanh %79 : vector<8x32xf32>
    %81 = arith.mulf %76, %80 : vector<8x32xf32>
    %82 = arith.index_cast %60 : i32 to index
    %c0_29 = arith.constant 0 : index
    %83 = vector.load %arg10[%82, %c0_29] : memref<64x32xf32, #tpu.memory_space<vmem>>, vector<8x32xf32>
    tpu.vector_store %arg10[%82, %c0_29], %81 {strides = array<i32>} : memref<64x32xf32, #tpu.memory_space<vmem>>, vector<8x32xf32>,
    %c3_i32 = arith.constant 3 : i32
    %c8_i32_30 = arith.constant 8 : i32
    %84 = arith.muli %c3_i32, %c8_i32_30 : i32
    %85 = tpu.assume_multiple %84, 8 : i32
    %86 = arith.index_cast %85 : i32 to index
    %c0_31 = arith.constant 0 : index
    %87 = vector.load %arg11[%86, %c0_31] : memref<64x128xf32, #tpu.memory_space<vmem>>, vector<8x128xf32>
    %cst_32 = arith.constant dense<0.000000e+00> : vector<8x128xf32>
    %88 = tpu.matmul %81, %7, %cst_32 {dimension_numbers = #tpu.dot_dimension_numbers<[1], [0], [0], [1], [0, 0, 1, 1], [], []>} : vector<8x32xf32>, vector<32x128xf32>, vector<8x128xf32> -> vector<8x128xf32>
    %89 = arith.addf %87, %88 : vector<8x128xf32>
    %cst_33 = arith.constant 5.000000e-01 : f32
    %90 = vector.broadcast %cst_33 : f32 to vector<8x128xf32>
    %91 = arith.mulf %90, %89 : vector<8x128xf32>
    %92 = math.tanh %91 : vector<8x128xf32>
    %cst_34 = arith.constant 1.000000e+00 : f32
    %93 = vector.broadcast %cst_34 : f32 to vector<8x128xf32>
    %94 = arith.addf %92, %93 : vector<8x128xf32>
    %cst_35 = arith.constant 5.000000e-01 : f32
    %95 = vector.broadcast %cst_35 : f32 to vector<8x128xf32>
    %96 = arith.mulf %95, %94 : vector<8x128xf32>
    %97 = math.tanh %89 : vector<8x128xf32>
    %98 = vector.extract_strided_slice %96 {offsets = [0, 0], sizes = [8, 32], strides = [1, 1]} : vector<8x128xf32> to vector<8x32xf32>
    %99 = vector.extract_strided_slice %96 {offsets = [0, 32], sizes = [8, 32], strides = [1, 1]} : vector<8x128xf32> to vector<8x32xf32>
    %100 = vector.extract_strided_slice %97 {offsets = [0, 64], sizes = [8, 32], strides = [1, 1]} : vector<8x128xf32> to vector<8x32xf32>
    %101 = vector.extract_strided_slice %96 {offsets = [0, 96], sizes = [8, 32], strides = [1, 1]} : vector<8x128xf32> to vector<8x32xf32>
    %102 = arith.mulf %99, %79 : vector<8x32xf32>
    %103 = arith.mulf %98, %100 : vector<8x32xf32>
    %104 = arith.addf %102, %103 : vector<8x32xf32>
    %105 = math.tanh %104 : vector<8x32xf32>
    %106 = arith.mulf %101, %105 : vector<8x32xf32>
    %107 = arith.index_cast %85 : i32 to index
    %c0_36 = arith.constant 0 : index
    %108 = vector.load %arg10[%107, %c0_36] : memref<64x32xf32, #tpu.memory_space<vmem>>, vector<8x32xf32>
    tpu.vector_store %arg10[%107, %c0_36], %106 {strides = array<i32>} : memref<64x32xf32, #tpu.memory_space<vmem>>, vector<8x32xf32>,
    %c4_i32 = arith.constant 4 : i32
    %c8_i32_37 = arith.constant 8 : i32
    %109 = arith.muli %c4_i32, %c8_i32_37 : i32
    %110 = tpu.assume_multiple %109, 8 : i32
    %111 = arith.index_cast %110 : i32 to index
    %c0_38 = arith.constant 0 : index
    %112 = vector.load %arg11[%111, %c0_38] : memref<64x128xf32, #tpu.memory_space<vmem>>, vector<8x128xf32>
    %cst_39 = arith.constant dense<0.000000e+00> : vector<8x128xf32>
    %113 = tpu.matmul %106, %7, %cst_39 {dimension_numbers = #tpu.dot_dimension_numbers<[1], [0], [0], [1], [0, 0, 1, 1], [], []>} : vector<8x32xf32>, vector<32x128xf32>, vector<8x128xf32> -> vector<8x128xf32>
    %114 = arith.addf %112, %113 : vector<8x128xf32>
    %cst_40 = arith.constant 5.000000e-01 : f32
    %115 = vector.broadcast %cst_40 : f32 to vector<8x128xf32>
    %116 = arith.mulf %115, %114 : vector<8x128xf32>
    %117 = math.tanh %116 : vector<8x128xf32>
    %cst_41 = arith.constant 1.000000e+00 : f32
    %118 = vector.broadcast %cst_41 : f32 to vector<8x128xf32>
    %119 = arith.addf %117, %118 : vector<8x128xf32>
    %cst_42 = arith.constant 5.000000e-01 : f32
    %120 = vector.broadcast %cst_42 : f32 to vector<8x128xf32>
    %121 = arith.mulf %120, %119 : vector<8x128xf32>
    %122 = math.tanh %114 : vector<8x128xf32>
    %123 = vector.extract_strided_slice %121 {offsets = [0, 0], sizes = [8, 32], strides = [1, 1]} : vector<8x128xf32> to vector<8x32xf32>
    %124 = vector.extract_strided_slice %121 {offsets = [0, 32], sizes = [8, 32], strides = [1, 1]} : vector<8x128xf32> to vector<8x32xf32>
    %125 = vector.extract_strided_slice %122 {offsets = [0, 64], sizes = [8, 32], strides = [1, 1]} : vector<8x128xf32> to vector<8x32xf32>
    %126 = vector.extract_strided_slice %121 {offsets = [0, 96], sizes = [8, 32], strides = [1, 1]} : vector<8x128xf32> to vector<8x32xf32>
    %127 = arith.mulf %124, %104 : vector<8x32xf32>
    %128 = arith.mulf %123, %125 : vector<8x32xf32>
    %129 = arith.addf %127, %128 : vector<8x32xf32>
    %130 = math.tanh %129 : vector<8x32xf32>
    %131 = arith.mulf %126, %130 : vector<8x32xf32>
    %132 = arith.index_cast %110 : i32 to index
    %c0_43 = arith.constant 0 : index
    %133 = vector.load %arg10[%132, %c0_43] : memref<64x32xf32, #tpu.memory_space<vmem>>, vector<8x32xf32>
    tpu.vector_store %arg10[%132, %c0_43], %131 {strides = array<i32>} : memref<64x32xf32, #tpu.memory_space<vmem>>, vector<8x32xf32>,
    %c5_i32 = arith.constant 5 : i32
    %c8_i32_44 = arith.constant 8 : i32
    %134 = arith.muli %c5_i32, %c8_i32_44 : i32
    %135 = tpu.assume_multiple %134, 8 : i32
    %136 = arith.index_cast %135 : i32 to index
    %c0_45 = arith.constant 0 : index
    %137 = vector.load %arg11[%136, %c0_45] : memref<64x128xf32, #tpu.memory_space<vmem>>, vector<8x128xf32>
    %cst_46 = arith.constant dense<0.000000e+00> : vector<8x128xf32>
    %138 = tpu.matmul %131, %7, %cst_46 {dimension_numbers = #tpu.dot_dimension_numbers<[1], [0], [0], [1], [0, 0, 1, 1], [], []>} : vector<8x32xf32>, vector<32x128xf32>, vector<8x128xf32> -> vector<8x128xf32>
    %139 = arith.addf %137, %138 : vector<8x128xf32>
    %cst_47 = arith.constant 5.000000e-01 : f32
    %140 = vector.broadcast %cst_47 : f32 to vector<8x128xf32>
    %141 = arith.mulf %140, %139 : vector<8x128xf32>
    %142 = math.tanh %141 : vector<8x128xf32>
    %cst_48 = arith.constant 1.000000e+00 : f32
    %143 = vector.broadcast %cst_48 : f32 to vector<8x128xf32>
    %144 = arith.addf %142, %143 : vector<8x128xf32>
    %cst_49 = arith.constant 5.000000e-01 : f32
    %145 = vector.broadcast %cst_49 : f32 to vector<8x128xf32>
    %146 = arith.mulf %145, %144 : vector<8x128xf32>
    %147 = math.tanh %139 : vector<8x128xf32>
    %148 = vector.extract_strided_slice %146 {offsets = [0, 0], sizes = [8, 32], strides = [1, 1]} : vector<8x128xf32> to vector<8x32xf32>
    %149 = vector.extract_strided_slice %146 {offsets = [0, 32], sizes = [8, 32], strides = [1, 1]} : vector<8x128xf32> to vector<8x32xf32>
    %150 = vector.extract_strided_slice %147 {offsets = [0, 64], sizes = [8, 32], strides = [1, 1]} : vector<8x128xf32> to vector<8x32xf32>
    %151 = vector.extract_strided_slice %146 {offsets = [0, 96], sizes = [8, 32], strides = [1, 1]} : vector<8x128xf32> to vector<8x32xf32>
    %152 = arith.mulf %149, %129 : vector<8x32xf32>
    %153 = arith.mulf %148, %150 : vector<8x32xf32>
    %154 = arith.addf %152, %153 : vector<8x32xf32>
    %155 = math.tanh %154 : vector<8x32xf32>
    %156 = arith.mulf %151, %155 : vector<8x32xf32>
    %157 = arith.index_cast %135 : i32 to index
    %c0_50 = arith.constant 0 : index
    %158 = vector.load %arg10[%157, %c0_50] : memref<64x32xf32, #tpu.memory_space<vmem>>, vector<8x32xf32>
    tpu.vector_store %arg10[%157, %c0_50], %156 {strides = array<i32>} : memref<64x32xf32, #tpu.memory_space<vmem>>, vector<8x32xf32>,
    %c6_i32 = arith.constant 6 : i32
    %c8_i32_51 = arith.constant 8 : i32
    %159 = arith.muli %c6_i32, %c8_i32_51 : i32
    %160 = tpu.assume_multiple %159, 8 : i32
    %161 = arith.index_cast %160 : i32 to index
    %c0_52 = arith.constant 0 : index
    %162 = vector.load %arg11[%161, %c0_52] : memref<64x128xf32, #tpu.memory_space<vmem>>, vector<8x128xf32>
    %cst_53 = arith.constant dense<0.000000e+00> : vector<8x128xf32>
    %163 = tpu.matmul %156, %7, %cst_53 {dimension_numbers = #tpu.dot_dimension_numbers<[1], [0], [0], [1], [0, 0, 1, 1], [], []>} : vector<8x32xf32>, vector<32x128xf32>, vector<8x128xf32> -> vector<8x128xf32>
    %164 = arith.addf %162, %163 : vector<8x128xf32>
    %cst_54 = arith.constant 5.000000e-01 : f32
    %165 = vector.broadcast %cst_54 : f32 to vector<8x128xf32>
    %166 = arith.mulf %165, %164 : vector<8x128xf32>
    %167 = math.tanh %166 : vector<8x128xf32>
    %cst_55 = arith.constant 1.000000e+00 : f32
    %168 = vector.broadcast %cst_55 : f32 to vector<8x128xf32>
    %169 = arith.addf %167, %168 : vector<8x128xf32>
    %cst_56 = arith.constant 5.000000e-01 : f32
    %170 = vector.broadcast %cst_56 : f32 to vector<8x128xf32>
    %171 = arith.mulf %170, %169 : vector<8x128xf32>
    %172 = math.tanh %164 : vector<8x128xf32>
    %173 = vector.extract_strided_slice %171 {offsets = [0, 0], sizes = [8, 32], strides = [1, 1]} : vector<8x128xf32> to vector<8x32xf32>
    %174 = vector.extract_strided_slice %171 {offsets = [0, 32], sizes = [8, 32], strides = [1, 1]} : vector<8x128xf32> to vector<8x32xf32>
    %175 = vector.extract_strided_slice %172 {offsets = [0, 64], sizes = [8, 32], strides = [1, 1]} : vector<8x128xf32> to vector<8x32xf32>
    %176 = vector.extract_strided_slice %171 {offsets = [0, 96], sizes = [8, 32], strides = [1, 1]} : vector<8x128xf32> to vector<8x32xf32>
    %177 = arith.mulf %174, %154 : vector<8x32xf32>
    %178 = arith.mulf %173, %175 : vector<8x32xf32>
    %179 = arith.addf %177, %178 : vector<8x32xf32>
    %180 = math.tanh %179 : vector<8x32xf32>
    %181 = arith.mulf %176, %180 : vector<8x32xf32>
    %182 = arith.index_cast %160 : i32 to index
    %c0_57 = arith.constant 0 : index
    %183 = vector.load %arg10[%182, %c0_57] : memref<64x32xf32, #tpu.memory_space<vmem>>, vector<8x32xf32>
    tpu.vector_store %arg10[%182, %c0_57], %181 {strides = array<i32>} : memref<64x32xf32, #tpu.memory_space<vmem>>, vector<8x32xf32>,
    %c7_i32 = arith.constant 7 : i32
    %c8_i32_58 = arith.constant 8 : i32
    %184 = arith.muli %c7_i32, %c8_i32_58 : i32
    %185 = tpu.assume_multiple %184, 8 : i32
    %186 = arith.index_cast %185 : i32 to index
    %c0_59 = arith.constant 0 : index
    %187 = vector.load %arg11[%186, %c0_59] : memref<64x128xf32, #tpu.memory_space<vmem>>, vector<8x128xf32>
    %cst_60 = arith.constant dense<0.000000e+00> : vector<8x128xf32>
    %188 = tpu.matmul %181, %7, %cst_60 {dimension_numbers = #tpu.dot_dimension_numbers<[1], [0], [0], [1], [0, 0, 1, 1], [], []>} : vector<8x32xf32>, vector<32x128xf32>, vector<8x128xf32> -> vector<8x128xf32>
    %189 = arith.addf %187, %188 : vector<8x128xf32>
    %cst_61 = arith.constant 5.000000e-01 : f32
    %190 = vector.broadcast %cst_61 : f32 to vector<8x128xf32>
    %191 = arith.mulf %190, %189 : vector<8x128xf32>
    %192 = math.tanh %191 : vector<8x128xf32>
    %cst_62 = arith.constant 1.000000e+00 : f32
    %193 = vector.broadcast %cst_62 : f32 to vector<8x128xf32>
    %194 = arith.addf %192, %193 : vector<8x128xf32>
    %cst_63 = arith.constant 5.000000e-01 : f32
    %195 = vector.broadcast %cst_63 : f32 to vector<8x128xf32>
    %196 = arith.mulf %195, %194 : vector<8x128xf32>
    %197 = math.tanh %189 : vector<8x128xf32>
    %198 = vector.extract_strided_slice %196 {offsets = [0, 0], sizes = [8, 32], strides = [1, 1]} : vector<8x128xf32> to vector<8x32xf32>
    %199 = vector.extract_strided_slice %196 {offsets = [0, 32], sizes = [8, 32], strides = [1, 1]} : vector<8x128xf32> to vector<8x32xf32>
    %200 = vector.extract_strided_slice %197 {offsets = [0, 64], sizes = [8, 32], strides = [1, 1]} : vector<8x128xf32> to vector<8x32xf32>
    %201 = vector.extract_strided_slice %196 {offsets = [0, 96], sizes = [8, 32], strides = [1, 1]} : vector<8x128xf32> to vector<8x32xf32>
    %202 = arith.mulf %199, %179 : vector<8x32xf32>
    %203 = arith.mulf %198, %200 : vector<8x32xf32>
    %204 = arith.addf %202, %203 : vector<8x32xf32>
    %205 = math.tanh %204 : vector<8x32xf32>
    %206 = arith.mulf %201, %205 : vector<8x32xf32>
    %207 = arith.index_cast %185 : i32 to index
    %c0_64 = arith.constant 0 : index
    %208 = vector.load %arg10[%207, %c0_64] : memref<64x32xf32, #tpu.memory_space<vmem>>, vector<8x32xf32>
    tpu.vector_store %arg10[%207, %c0_64], %206 {strides = array<i32>} : memref<64x32xf32, #tpu.memory_space<vmem>>, vector<8x32xf32>,
    %c8_i32_65 = arith.constant 8 : i32
    %c0_66 = arith.constant 0 : index
    %c0_67 = arith.constant 0 : index
    %209 = vector.load %arg10[%c0_66, %c0_67] : memref<64x32xf32, #tpu.memory_space<vmem>>, vector<64x32xf32>
    %c0_68 = arith.constant 0 : index
    %c0_69 = arith.constant 0 : index
    %210 = vector.load %arg4[%c0_68, %c0_69] : memref<32x128xf32, #tpu.memory_space<vmem>>, vector<32x128xf32>
    %cst_70 = arith.constant dense<0.000000e+00> : vector<64x128xf32>
    %211 = tpu.matmul %209, %210, %cst_70 {dimension_numbers = #tpu.dot_dimension_numbers<[1], [0], [0], [1], [0, 0, 1, 1], [], []>} : vector<64x32xf32>, vector<32x128xf32>, vector<64x128xf32> -> vector<64x128xf32>
    %c0_71 = arith.constant 0 : index
    %c0_72 = arith.constant 0 : index
    %212 = vector.load %arg6[%c0_71, %c0_72] : memref<1x128xf32, #tpu.memory_space<vmem>>, vector<1x128xf32>
    %213 = vector.broadcast %212 : vector<1x128xf32> to vector<64x128xf32>
    %214 = arith.addf %211, %213 : vector<64x128xf32>
    %c0_73 = arith.constant 0 : index
    %c0_74 = arith.constant 0 : index
    %215 = vector.load %arg11[%c0_73, %c0_74] : memref<64x128xf32, #tpu.memory_space<vmem>>, vector<64x128xf32>
    tpu.vector_store %arg11[%c0_73, %c0_74], %214 {strides = array<i32>} : memref<64x128xf32, #tpu.memory_space<vmem>>, vector<64x128xf32>,
    %c0_75 = arith.constant 0 : index
    %c0_76 = arith.constant 0 : index
    %216 = vector.load %arg5[%c0_75, %c0_76] : memref<32x128xf32, #tpu.memory_space<vmem>>, vector<32x128xf32>
    %cst_77 = arith.constant 0.000000e+00 : f32
    %217 = vector.broadcast %cst_77 : f32 to vector<8x32xf32>
    %c0_i32_78 = arith.constant 0 : i32
    %c8_i32_79 = arith.constant 8 : i32
    %218 = arith.muli %c0_i32_78, %c8_i32_79 : i32
    %219 = tpu.assume_multiple %218, 8 : i32
    %220 = arith.index_cast %219 : i32 to index
    %c0_80 = arith.constant 0 : index
    %221 = vector.load %arg11[%220, %c0_80] : memref<64x128xf32, #tpu.memory_space<vmem>>, vector<8x128xf32>
    %cst_81 = arith.constant dense<0.000000e+00> : vector<8x128xf32>
    %222 = tpu.matmul %217, %216, %cst_81 {dimension_numbers = #tpu.dot_dimension_numbers<[1], [0], [0], [1], [0, 0, 1, 1], [], []>} : vector<8x32xf32>, vector<32x128xf32>, vector<8x128xf32> -> vector<8x128xf32>
    %223 = arith.addf %221, %222 : vector<8x128xf32>
    %cst_82 = arith.constant 5.000000e-01 : f32
    %224 = vector.broadcast %cst_82 : f32 to vector<8x128xf32>
    %225 = arith.mulf %224, %223 : vector<8x128xf32>
    %226 = math.tanh %225 : vector<8x128xf32>
    %cst_83 = arith.constant 1.000000e+00 : f32
    %227 = vector.broadcast %cst_83 : f32 to vector<8x128xf32>
    %228 = arith.addf %226, %227 : vector<8x128xf32>
    %cst_84 = arith.constant 5.000000e-01 : f32
    %229 = vector.broadcast %cst_84 : f32 to vector<8x128xf32>
    %230 = arith.mulf %229, %228 : vector<8x128xf32>
    %231 = math.tanh %223 : vector<8x128xf32>
    %232 = vector.extract_strided_slice %230 {offsets = [0, 0], sizes = [8, 32], strides = [1, 1]} : vector<8x128xf32> to vector<8x32xf32>
    %233 = vector.extract_strided_slice %230 {offsets = [0, 32], sizes = [8, 32], strides = [1, 1]} : vector<8x128xf32> to vector<8x32xf32>
    %234 = vector.extract_strided_slice %231 {offsets = [0, 64], sizes = [8, 32], strides = [1, 1]} : vector<8x128xf32> to vector<8x32xf32>
    %235 = vector.extract_strided_slice %230 {offsets = [0, 96], sizes = [8, 32], strides = [1, 1]} : vector<8x128xf32> to vector<8x32xf32>
    %236 = arith.mulf %233, %217 : vector<8x32xf32>
    %237 = arith.mulf %232, %234 : vector<8x32xf32>
    %238 = arith.addf %236, %237 : vector<8x32xf32>
    %239 = math.tanh %238 : vector<8x32xf32>
    %240 = arith.mulf %235, %239 : vector<8x32xf32>
    %c1_i32_85 = arith.constant 1 : i32
    %c8_i32_86 = arith.constant 8 : i32
    %241 = arith.muli %c1_i32_85, %c8_i32_86 : i32
    %242 = tpu.assume_multiple %241, 8 : i32
    %243 = arith.index_cast %242 : i32 to index
    %c0_87 = arith.constant 0 : index
    %244 = vector.load %arg11[%243, %c0_87] : memref<64x128xf32, #tpu.memory_space<vmem>>, vector<8x128xf32>
    %cst_88 = arith.constant dense<0.000000e+00> : vector<8x128xf32>
    %245 = tpu.matmul %240, %216, %cst_88 {dimension_numbers = #tpu.dot_dimension_numbers<[1], [0], [0], [1], [0, 0, 1, 1], [], []>} : vector<8x32xf32>, vector<32x128xf32>, vector<8x128xf32> -> vector<8x128xf32>
    %246 = arith.addf %244, %245 : vector<8x128xf32>
    %cst_89 = arith.constant 5.000000e-01 : f32
    %247 = vector.broadcast %cst_89 : f32 to vector<8x128xf32>
    %248 = arith.mulf %247, %246 : vector<8x128xf32>
    %249 = math.tanh %248 : vector<8x128xf32>
    %cst_90 = arith.constant 1.000000e+00 : f32
    %250 = vector.broadcast %cst_90 : f32 to vector<8x128xf32>
    %251 = arith.addf %249, %250 : vector<8x128xf32>
    %cst_91 = arith.constant 5.000000e-01 : f32
    %252 = vector.broadcast %cst_91 : f32 to vector<8x128xf32>
    %253 = arith.mulf %252, %251 : vector<8x128xf32>
    %254 = math.tanh %246 : vector<8x128xf32>
    %255 = vector.extract_strided_slice %253 {offsets = [0, 0], sizes = [8, 32], strides = [1, 1]} : vector<8x128xf32> to vector<8x32xf32>
    %256 = vector.extract_strided_slice %253 {offsets = [0, 32], sizes = [8, 32], strides = [1, 1]} : vector<8x128xf32> to vector<8x32xf32>
    %257 = vector.extract_strided_slice %254 {offsets = [0, 64], sizes = [8, 32], strides = [1, 1]} : vector<8x128xf32> to vector<8x32xf32>
    %258 = vector.extract_strided_slice %253 {offsets = [0, 96], sizes = [8, 32], strides = [1, 1]} : vector<8x128xf32> to vector<8x32xf32>
    %259 = arith.mulf %256, %238 : vector<8x32xf32>
    %260 = arith.mulf %255, %257 : vector<8x32xf32>
    %261 = arith.addf %259, %260 : vector<8x32xf32>
    %262 = math.tanh %261 : vector<8x32xf32>
    %263 = arith.mulf %258, %262 : vector<8x32xf32>
    %c2_i32_92 = arith.constant 2 : i32
    %c8_i32_93 = arith.constant 8 : i32
    %264 = arith.muli %c2_i32_92, %c8_i32_93 : i32
    %265 = tpu.assume_multiple %264, 8 : i32
    %266 = arith.index_cast %265 : i32 to index
    %c0_94 = arith.constant 0 : index
    %267 = vector.load %arg11[%266, %c0_94] : memref<64x128xf32, #tpu.memory_space<vmem>>, vector<8x128xf32>
    %cst_95 = arith.constant dense<0.000000e+00> : vector<8x128xf32>
    %268 = tpu.matmul %263, %216, %cst_95 {dimension_numbers = #tpu.dot_dimension_numbers<[1], [0], [0], [1], [0, 0, 1, 1], [], []>} : vector<8x32xf32>, vector<32x128xf32>, vector<8x128xf32> -> vector<8x128xf32>
    %269 = arith.addf %267, %268 : vector<8x128xf32>
    %cst_96 = arith.constant 5.000000e-01 : f32
    %270 = vector.broadcast %cst_96 : f32 to vector<8x128xf32>
    %271 = arith.mulf %270, %269 : vector<8x128xf32>
    %272 = math.tanh %271 : vector<8x128xf32>
    %cst_97 = arith.constant 1.000000e+00 : f32
    %273 = vector.broadcast %cst_97 : f32 to vector<8x128xf32>
    %274 = arith.addf %272, %273 : vector<8x128xf32>
    %cst_98 = arith.constant 5.000000e-01 : f32
    %275 = vector.broadcast %cst_98 : f32 to vector<8x128xf32>
    %276 = arith.mulf %275, %274 : vector<8x128xf32>
    %277 = math.tanh %269 : vector<8x128xf32>
    %278 = vector.extract_strided_slice %276 {offsets = [0, 0], sizes = [8, 32], strides = [1, 1]} : vector<8x128xf32> to vector<8x32xf32>
    %279 = vector.extract_strided_slice %276 {offsets = [0, 32], sizes = [8, 32], strides = [1, 1]} : vector<8x128xf32> to vector<8x32xf32>
    %280 = vector.extract_strided_slice %277 {offsets = [0, 64], sizes = [8, 32], strides = [1, 1]} : vector<8x128xf32> to vector<8x32xf32>
    %281 = vector.extract_strided_slice %276 {offsets = [0, 96], sizes = [8, 32], strides = [1, 1]} : vector<8x128xf32> to vector<8x32xf32>
    %282 = arith.mulf %279, %261 : vector<8x32xf32>
    %283 = arith.mulf %278, %280 : vector<8x32xf32>
    %284 = arith.addf %282, %283 : vector<8x32xf32>
    %285 = math.tanh %284 : vector<8x32xf32>
    %286 = arith.mulf %281, %285 : vector<8x32xf32>
    %c3_i32_99 = arith.constant 3 : i32
    %c8_i32_100 = arith.constant 8 : i32
    %287 = arith.muli %c3_i32_99, %c8_i32_100 : i32
    %288 = tpu.assume_multiple %287, 8 : i32
    %289 = arith.index_cast %288 : i32 to index
    %c0_101 = arith.constant 0 : index
    %290 = vector.load %arg11[%289, %c0_101] : memref<64x128xf32, #tpu.memory_space<vmem>>, vector<8x128xf32>
    %cst_102 = arith.constant dense<0.000000e+00> : vector<8x128xf32>
    %291 = tpu.matmul %286, %216, %cst_102 {dimension_numbers = #tpu.dot_dimension_numbers<[1], [0], [0], [1], [0, 0, 1, 1], [], []>} : vector<8x32xf32>, vector<32x128xf32>, vector<8x128xf32> -> vector<8x128xf32>
    %292 = arith.addf %290, %291 : vector<8x128xf32>
    %cst_103 = arith.constant 5.000000e-01 : f32
    %293 = vector.broadcast %cst_103 : f32 to vector<8x128xf32>
    %294 = arith.mulf %293, %292 : vector<8x128xf32>
    %295 = math.tanh %294 : vector<8x128xf32>
    %cst_104 = arith.constant 1.000000e+00 : f32
    %296 = vector.broadcast %cst_104 : f32 to vector<8x128xf32>
    %297 = arith.addf %295, %296 : vector<8x128xf32>
    %cst_105 = arith.constant 5.000000e-01 : f32
    %298 = vector.broadcast %cst_105 : f32 to vector<8x128xf32>
    %299 = arith.mulf %298, %297 : vector<8x128xf32>
    %300 = math.tanh %292 : vector<8x128xf32>
    %301 = vector.extract_strided_slice %299 {offsets = [0, 0], sizes = [8, 32], strides = [1, 1]} : vector<8x128xf32> to vector<8x32xf32>
    %302 = vector.extract_strided_slice %299 {offsets = [0, 32], sizes = [8, 32], strides = [1, 1]} : vector<8x128xf32> to vector<8x32xf32>
    %303 = vector.extract_strided_slice %300 {offsets = [0, 64], sizes = [8, 32], strides = [1, 1]} : vector<8x128xf32> to vector<8x32xf32>
    %304 = vector.extract_strided_slice %299 {offsets = [0, 96], sizes = [8, 32], strides = [1, 1]} : vector<8x128xf32> to vector<8x32xf32>
    %305 = arith.mulf %302, %284 : vector<8x32xf32>
    %306 = arith.mulf %301, %303 : vector<8x32xf32>
    %307 = arith.addf %305, %306 : vector<8x32xf32>
    %308 = math.tanh %307 : vector<8x32xf32>
    %309 = arith.mulf %304, %308 : vector<8x32xf32>
    %c4_i32_106 = arith.constant 4 : i32
    %c8_i32_107 = arith.constant 8 : i32
    %310 = arith.muli %c4_i32_106, %c8_i32_107 : i32
    %311 = tpu.assume_multiple %310, 8 : i32
    %312 = arith.index_cast %311 : i32 to index
    %c0_108 = arith.constant 0 : index
    %313 = vector.load %arg11[%312, %c0_108] : memref<64x128xf32, #tpu.memory_space<vmem>>, vector<8x128xf32>
    %cst_109 = arith.constant dense<0.000000e+00> : vector<8x128xf32>
    %314 = tpu.matmul %309, %216, %cst_109 {dimension_numbers = #tpu.dot_dimension_numbers<[1], [0], [0], [1], [0, 0, 1, 1], [], []>} : vector<8x32xf32>, vector<32x128xf32>, vector<8x128xf32> -> vector<8x128xf32>
    %315 = arith.addf %313, %314 : vector<8x128xf32>
    %cst_110 = arith.constant 5.000000e-01 : f32
    %316 = vector.broadcast %cst_110 : f32 to vector<8x128xf32>
    %317 = arith.mulf %316, %315 : vector<8x128xf32>
    %318 = math.tanh %317 : vector<8x128xf32>
    %cst_111 = arith.constant 1.000000e+00 : f32
    %319 = vector.broadcast %cst_111 : f32 to vector<8x128xf32>
    %320 = arith.addf %318, %319 : vector<8x128xf32>
    %cst_112 = arith.constant 5.000000e-01 : f32
    %321 = vector.broadcast %cst_112 : f32 to vector<8x128xf32>
    %322 = arith.mulf %321, %320 : vector<8x128xf32>
    %323 = math.tanh %315 : vector<8x128xf32>
    %324 = vector.extract_strided_slice %322 {offsets = [0, 0], sizes = [8, 32], strides = [1, 1]} : vector<8x128xf32> to vector<8x32xf32>
    %325 = vector.extract_strided_slice %322 {offsets = [0, 32], sizes = [8, 32], strides = [1, 1]} : vector<8x128xf32> to vector<8x32xf32>
    %326 = vector.extract_strided_slice %323 {offsets = [0, 64], sizes = [8, 32], strides = [1, 1]} : vector<8x128xf32> to vector<8x32xf32>
    %327 = vector.extract_strided_slice %322 {offsets = [0, 96], sizes = [8, 32], strides = [1, 1]} : vector<8x128xf32> to vector<8x32xf32>
    %328 = arith.mulf %325, %307 : vector<8x32xf32>
    %329 = arith.mulf %324, %326 : vector<8x32xf32>
    %330 = arith.addf %328, %329 : vector<8x32xf32>
    %331 = math.tanh %330 : vector<8x32xf32>
    %332 = arith.mulf %327, %331 : vector<8x32xf32>
    %c5_i32_113 = arith.constant 5 : i32
    %c8_i32_114 = arith.constant 8 : i32
    %333 = arith.muli %c5_i32_113, %c8_i32_114 : i32
    %334 = tpu.assume_multiple %333, 8 : i32
    %335 = arith.index_cast %334 : i32 to index
    %c0_115 = arith.constant 0 : index
    %336 = vector.load %arg11[%335, %c0_115] : memref<64x128xf32, #tpu.memory_space<vmem>>, vector<8x128xf32>
    %cst_116 = arith.constant dense<0.000000e+00> : vector<8x128xf32>
    %337 = tpu.matmul %332, %216, %cst_116 {dimension_numbers = #tpu.dot_dimension_numbers<[1], [0], [0], [1], [0, 0, 1, 1], [], []>} : vector<8x32xf32>, vector<32x128xf32>, vector<8x128xf32> -> vector<8x128xf32>
    %338 = arith.addf %336, %337 : vector<8x128xf32>
    %cst_117 = arith.constant 5.000000e-01 : f32
    %339 = vector.broadcast %cst_117 : f32 to vector<8x128xf32>
    %340 = arith.mulf %339, %338 : vector<8x128xf32>
    %341 = math.tanh %340 : vector<8x128xf32>
    %cst_118 = arith.constant 1.000000e+00 : f32
    %342 = vector.broadcast %cst_118 : f32 to vector<8x128xf32>
    %343 = arith.addf %341, %342 : vector<8x128xf32>
    %cst_119 = arith.constant 5.000000e-01 : f32
    %344 = vector.broadcast %cst_119 : f32 to vector<8x128xf32>
    %345 = arith.mulf %344, %343 : vector<8x128xf32>
    %346 = math.tanh %338 : vector<8x128xf32>
    %347 = vector.extract_strided_slice %345 {offsets = [0, 0], sizes = [8, 32], strides = [1, 1]} : vector<8x128xf32> to vector<8x32xf32>
    %348 = vector.extract_strided_slice %345 {offsets = [0, 32], sizes = [8, 32], strides = [1, 1]} : vector<8x128xf32> to vector<8x32xf32>
    %349 = vector.extract_strided_slice %346 {offsets = [0, 64], sizes = [8, 32], strides = [1, 1]} : vector<8x128xf32> to vector<8x32xf32>
    %350 = vector.extract_strided_slice %345 {offsets = [0, 96], sizes = [8, 32], strides = [1, 1]} : vector<8x128xf32> to vector<8x32xf32>
    %351 = arith.mulf %348, %330 : vector<8x32xf32>
    %352 = arith.mulf %347, %349 : vector<8x32xf32>
    %353 = arith.addf %351, %352 : vector<8x32xf32>
    %354 = math.tanh %353 : vector<8x32xf32>
    %355 = arith.mulf %350, %354 : vector<8x32xf32>
    %c6_i32_120 = arith.constant 6 : i32
    %c8_i32_121 = arith.constant 8 : i32
    %356 = arith.muli %c6_i32_120, %c8_i32_121 : i32
    %357 = tpu.assume_multiple %356, 8 : i32
    %358 = arith.index_cast %357 : i32 to index
    %c0_122 = arith.constant 0 : index
    %359 = vector.load %arg11[%358, %c0_122] : memref<64x128xf32, #tpu.memory_space<vmem>>, vector<8x128xf32>
    %cst_123 = arith.constant dense<0.000000e+00> : vector<8x128xf32>
    %360 = tpu.matmul %355, %216, %cst_123 {dimension_numbers = #tpu.dot_dimension_numbers<[1], [0], [0], [1], [0, 0, 1, 1], [], []>} : vector<8x32xf32>, vector<32x128xf32>, vector<8x128xf32> -> vector<8x128xf32>
    %361 = arith.addf %359, %360 : vector<8x128xf32>
    %cst_124 = arith.constant 5.000000e-01 : f32
    %362 = vector.broadcast %cst_124 : f32 to vector<8x128xf32>
    %363 = arith.mulf %362, %361 : vector<8x128xf32>
    %364 = math.tanh %363 : vector<8x128xf32>
    %cst_125 = arith.constant 1.000000e+00 : f32
    %365 = vector.broadcast %cst_125 : f32 to vector<8x128xf32>
    %366 = arith.addf %364, %365 : vector<8x128xf32>
    %cst_126 = arith.constant 5.000000e-01 : f32
    %367 = vector.broadcast %cst_126 : f32 to vector<8x128xf32>
    %368 = arith.mulf %367, %366 : vector<8x128xf32>
    %369 = math.tanh %361 : vector<8x128xf32>
    %370 = vector.extract_strided_slice %368 {offsets = [0, 0], sizes = [8, 32], strides = [1, 1]} : vector<8x128xf32> to vector<8x32xf32>
    %371 = vector.extract_strided_slice %368 {offsets = [0, 32], sizes = [8, 32], strides = [1, 1]} : vector<8x128xf32> to vector<8x32xf32>
    %372 = vector.extract_strided_slice %369 {offsets = [0, 64], sizes = [8, 32], strides = [1, 1]} : vector<8x128xf32> to vector<8x32xf32>
    %373 = vector.extract_strided_slice %368 {offsets = [0, 96], sizes = [8, 32], strides = [1, 1]} : vector<8x128xf32> to vector<8x32xf32>
    %374 = arith.mulf %371, %353 : vector<8x32xf32>
    %375 = arith.mulf %370, %372 : vector<8x32xf32>
    %376 = arith.addf %374, %375 : vector<8x32xf32>
    %377 = math.tanh %376 : vector<8x32xf32>
    %378 = arith.mulf %373, %377 : vector<8x32xf32>
    %c7_i32_127 = arith.constant 7 : i32
    %c8_i32_128 = arith.constant 8 : i32
    %379 = arith.muli %c7_i32_127, %c8_i32_128 : i32
    %380 = tpu.assume_multiple %379, 8 : i32
    %381 = arith.index_cast %380 : i32 to index
    %c0_129 = arith.constant 0 : index
    %382 = vector.load %arg11[%381, %c0_129] : memref<64x128xf32, #tpu.memory_space<vmem>>, vector<8x128xf32>
    %cst_130 = arith.constant dense<0.000000e+00> : vector<8x128xf32>
    %383 = tpu.matmul %378, %216, %cst_130 {dimension_numbers = #tpu.dot_dimension_numbers<[1], [0], [0], [1], [0, 0, 1, 1], [], []>} : vector<8x32xf32>, vector<32x128xf32>, vector<8x128xf32> -> vector<8x128xf32>
    %384 = arith.addf %382, %383 : vector<8x128xf32>
    %cst_131 = arith.constant 5.000000e-01 : f32
    %385 = vector.broadcast %cst_131 : f32 to vector<8x128xf32>
    %386 = arith.mulf %385, %384 : vector<8x128xf32>
    %387 = math.tanh %386 : vector<8x128xf32>
    %cst_132 = arith.constant 1.000000e+00 : f32
    %388 = vector.broadcast %cst_132 : f32 to vector<8x128xf32>
    %389 = arith.addf %387, %388 : vector<8x128xf32>
    %cst_133 = arith.constant 5.000000e-01 : f32
    %390 = vector.broadcast %cst_133 : f32 to vector<8x128xf32>
    %391 = arith.mulf %390, %389 : vector<8x128xf32>
    %392 = math.tanh %384 : vector<8x128xf32>
    %393 = vector.extract_strided_slice %391 {offsets = [0, 0], sizes = [8, 32], strides = [1, 1]} : vector<8x128xf32> to vector<8x32xf32>
    %394 = vector.extract_strided_slice %391 {offsets = [0, 32], sizes = [8, 32], strides = [1, 1]} : vector<8x128xf32> to vector<8x32xf32>
    %395 = vector.extract_strided_slice %392 {offsets = [0, 64], sizes = [8, 32], strides = [1, 1]} : vector<8x128xf32> to vector<8x32xf32>
    %396 = vector.extract_strided_slice %391 {offsets = [0, 96], sizes = [8, 32], strides = [1, 1]} : vector<8x128xf32> to vector<8x32xf32>
    %397 = arith.mulf %394, %376 : vector<8x32xf32>
    %398 = arith.mulf %393, %395 : vector<8x32xf32>
    %399 = arith.addf %397, %398 : vector<8x32xf32>
    %400 = math.tanh %399 : vector<8x32xf32>
    %401 = arith.mulf %396, %400 : vector<8x32xf32>
    %c8_i32_134 = arith.constant 8 : i32
    %c0_135 = arith.constant 0 : index
    %c0_136 = arith.constant 0 : index
    %402 = vector.load %arg7[%c0_135, %c0_136] : memref<32x1xf32, #tpu.memory_space<vmem>>, vector<32x1xf32>
    %cst_137 = arith.constant dense<0.000000e+00> : vector<8x1xf32>
    %403 = tpu.matmul %401, %402, %cst_137 {dimension_numbers = #tpu.dot_dimension_numbers<[1], [0], [0], [1], [0, 0, 1, 1], [], []>} : vector<8x32xf32>, vector<32x1xf32>, vector<8x1xf32> -> vector<8x1xf32>
    %c0_138 = arith.constant 0 : index
    %c0_139 = arith.constant 0 : index
    %404 = vector.load %arg8[%c0_138, %c0_139] : memref<1x1xf32, #tpu.memory_space<vmem>>, vector<1x1xf32>
    %405 = vector.broadcast %404 : vector<1x1xf32> to vector<8x1xf32>
    %406 = arith.addf %403, %405 : vector<8x1xf32>
    %c0_140 = arith.constant 0 : index
    %c0_141 = arith.constant 0 : index
    %407 = vector.load %arg9[%c0_140, %c0_141] : memref<8x1xf32, #tpu.memory_space<vmem>>, vector<8x1xf32>
    tpu.vector_store %arg9[%c0_140, %c0_141], %406 {strides = array<i32>} : memref<8x1xf32, #tpu.memory_space<vmem>>, vector<8x1xf32>,
    return
  }
}

</mosaic_0001>

<llo_original>
// kernel: lstm_ecf_forward.1
$region0: #{lstm_ecf_forward.1}
  #allocation0 [shape = 'u32[]', space=smem, size = 0x4, offset = 0x4, fixed_abs, tag = 'smem constant byte address 0x4 - core index']
  #allocation1 [shape = 'u32[72,128]{1,0:T(1,128)}', space=vmem, size = 0x9000, scoped, tag = 'internal scratch']
  #allocation2 [shape = 'f32[64,32]{1,0:T(8,128)}', space=vmem, size = 0x8000, scoped, tag = 'scratch operand']
  #allocation3 [shape = 'f32[64,128]{1,0:T(8,128)}', space=vmem, size = 0x8000, scoped, tag = 'scratch operand']
  #allocation4 [shape = 'f32[1,1]{1,0:T(1,128)S(1)}', space=vmem, size = 0x200, scoped, tag = 'scoped memory for lstm_ecf_forward.1']
  %s0 = inlined_call_operand.vmem [shape: f32[64,8], index: 0, kind: input, shape index: {}]
  %s1 = inlined_call_operand.vmem [shape: f32[8,128], index: 1, kind: input, shape index: {}]
  %s2 = inlined_call_operand.vmem [shape: f32[32,128], index: 2, kind: input, shape index: {}]
  %s3 = inlined_call_operand.vmem [shape: f32[1,128], index: 3, kind: input, shape index: {}]
  %s4 = inlined_call_operand.vmem [shape: f32[32,128], index: 4, kind: input, shape index: {}]
  %s5 = inlined_call_operand.vmem [shape: f32[32,128], index: 5, kind: input, shape index: {}]
  %s6 = inlined_call_operand.vmem [shape: f32[1,128], index: 6, kind: input, shape index: {}]
  %s7 = inlined_call_operand.vmem [shape: f32[32,1], index: 7, kind: input, shape index: {}]
  %s8 = inlined_call_operand.<no memory space> [shape: f32[1,1], index: 8, kind: input, shape index: {}]
  %s9 = inlined_call_operand.vmem [shape: f32[8,1], index: 9, kind: output, shape index: {}]
  %s10 = sld [smem:[#allocation0]]
  $region46: #{lstm_ecf_forward.1} parent=0
    _
  %s12 = ssub.s32 1, %s10
  %s13 = scalar_select 0, %s12, %s10
  %v14 = vstv %s8
  %15 = vst [vmem:[#allocation4] sm:$0x1] %v14
  // Predicated region
  $region2: #{lstm_ecf_forward.1} parent=0 // pred_check
    _
  $region3: #{lstm_ecf_forward.1} parent=0 // pred_check_branch
    %17 = sbr.rel (0) target = $region5
  $region4: #{lstm_ecf_forward.1} parent=0 // pred_region
    _
  $region5: #{lstm_ecf_forward.1} parent=0 // pred_fallthru
    _
  // Predicated region
  $region6: #{lstm_ecf_forward.1} parent=0 // pred_check
    _
  $region7: #{lstm_ecf_forward.1} parent=0 // pred_check_branch
    %19 = sbr.rel (0) target = $region9
  $region8: #{lstm_ecf_forward.1} parent=0 // pred_region
    _
  $region9: #{lstm_ecf_forward.1} parent=0 // pred_fallthru
    _
  // Predicated region
  $region10: #{lstm_ecf_forward.1} parent=0 // pred_check
    _
  $region11: #{lstm_ecf_forward.1} parent=0 // pred_check_branch
    %21 = sbr.rel (0) target = $region13
  $region12: #{lstm_ecf_forward.1} parent=0 // pred_region
    _
  $region13: #{lstm_ecf_forward.1} parent=0 // pred_fallthru
    _
  // Predicated region
  $region14: #{lstm_ecf_forward.1} parent=0 // pred_check
    _
  $region15: #{lstm_ecf_forward.1} parent=0 // pred_check_branch
    %23 = sbr.rel (0) target = $region17
  $region16: #{lstm_ecf_forward.1} parent=0 // pred_region
    _
  $region17: #{lstm_ecf_forward.1} parent=0 // pred_fallthru
    _
  // Predicated region
  $region18: #{lstm_ecf_forward.1} parent=0 // pred_check
    _
  $region19: #{lstm_ecf_forward.1} parent=0 // pred_check_branch
    %25 = sbr.rel (0) target = $region21
  $region20: #{lstm_ecf_forward.1} parent=0 // pred_region
    _
  $region21: #{lstm_ecf_forward.1} parent=0 // pred_fallthru
    _
  // Predicated region
  $region22: #{lstm_ecf_forward.1} parent=0 // pred_check
    _
  $region23: #{lstm_ecf_forward.1} parent=0 // pred_check_branch
    %27 = sbr.rel (0) target = $region25
  $region24: #{lstm_ecf_forward.1} parent=0 // pred_region
    _
  $region25: #{lstm_ecf_forward.1} parent=0 // pred_fallthru
    _
  // Predicated region
  $region26: #{lstm_ecf_forward.1} parent=0 // pred_check
    _
  $region27: #{lstm_ecf_forward.1} parent=0 // pred_check_branch
    %29 = sbr.rel (0) target = $region29
  $region28: #{lstm_ecf_forward.1} parent=0 // pred_region
    _
  $region29: #{lstm_ecf_forward.1} parent=0 // pred_fallthru
    _
  // Predicated region
  $region30: #{lstm_ecf_forward.1} parent=0 // pred_check
    _
  $region31: #{lstm_ecf_forward.1} parent=0 // pred_check_branch
    %31 = sbr.rel (0) target = $region33
  $region32: #{lstm_ecf_forward.1} parent=0 // pred_region
    _
  $region33: #{lstm_ecf_forward.1} parent=0 // pred_fallthru
    _
  // Predicated region
  $region34: #{lstm_ecf_forward.1} parent=0 // pred_check
    _
  $region35: #{lstm_ecf_forward.1} parent=0 // pred_check_branch
    %33 = sbr.rel (0) target = $region37
  $region36: #{lstm_ecf_forward.1} parent=0 // pred_region
    _
  $region37: #{lstm_ecf_forward.1} parent=0 // pred_fallthru
    _
  %v34 = vld [vmem:[%s0] sm:$0xff]
  %v35 = vld [vmem:[%s0 + $0x8] sm:$0xff]
  %v36 = vld [vmem:[%s0 + $0x10] sm:$0xff]
  %v37 = vld [vmem:[%s0 + $0x18] sm:$0xff]
  %v38 = vld [vmem:[%s0 + $0x20] sm:$0xff]
  %v39 = vld [vmem:[%s0 + $0x28] sm:$0xff]
  %v40 = vld [vmem:[%s0 + $0x30] sm:$0xff]
  %v41 = vld [vmem:[%s0 + $0x38] sm:$0xff]
  %v42 = vld [vmem:[%s1] sm:$0xff]
  %v43 = vld [vmem:[%s3] sm:$0x1]
  %v45 = vperm.slane %v43, 0
  %vm47 = vcmask 64512
  %v49 = vsel %vm47, %v34, 0
  %v52 = vsel %vm47, %v35, 0
  %v55 = vsel %vm47, %v36, 0
  %v58 = vsel %vm47, %v37, 0
  %v61 = vsel %vm47, %v38, 0
  %v64 = vsel %vm47, %v39, 0
  %v67 = vsel %vm47, %v40, 0
  %v70 = vsel %vm47, %v41, 0
  %72 = vmatpush.msra.mxu0 0.0
  %73 = vmatpush.msra.mxu0 0.0
  %74 = vmatpush.msra.mxu0 0.0
  %75 = vmatpush.msra.mxu0 0.0
  %76 = vmatpush.msra.mxu0 0.0
  %77 = vmatpush.msra.mxu0 0.0
  %78 = vmatpush.msra.mxu0 0.0
  %79 = vmatpush.msra.mxu0 0.0
  %80 = vmatpush.msra.mxu0 0.0
  %81 = vmatpush.msra.mxu0 0.0
  %82 = vmatpush.msra.mxu0 0.0
  %83 = vmatpush.msra.mxu0 0.0
  %84 = vmatpush.msra.mxu0 0.0
  %85 = vmatpush.msra.mxu0 0.0
  %86 = vmatpush.msra.mxu0 0.0
  %87 = vmatpush.msra.mxu0 %v42
  %88 = vmatmul.f32.gmra.mxu0 %v49
  %v89 = vpop.f32.mrf.mxu0
  %v90 = vadd.f32 %v45, %v89
  %91 = vmatmul.f32.gmra.mxu0 %v52
  %v92 = vpop.f32.mrf.mxu0
  %v93 = vadd.f32 %v45, %v92
  %94 = vmatmul.f32.gmra.mxu0 %v55
  %v95 = vpop.f32.mrf.mxu0
  %v96 = vadd.f32 %v45, %v95
  %97 = vmatmul.f32.gmra.mxu0 %v58
  %v98 = vpop.f32.mrf.mxu0
  %v99 = vadd.f32 %v45, %v98
  %100 = vmatmul.f32.gmra.mxu0 %v61
  %v101 = vpop.f32.mrf.mxu0
  %v102 = vadd.f32 %v45, %v101
  %103 = vmatmul.f32.gmra.mxu0 %v64
  %v104 = vpop.f32.mrf.mxu0
  %v105 = vadd.f32 %v45, %v104
  %106 = vmatmul.f32.gmra.mxu0 %v67
  %v107 = vpop.f32.mrf.mxu0
  %v108 = vadd.f32 %v45, %v107
  %109 = vmatmul.f32.gmra.mxu0 %v70
  %v110 = vpop.f32.mrf.mxu0
  %v111 = vadd.f32 %v45, %v110
  %112 = vdwg.mxu0
  %113 = vst [vmem:[#allocation3] sm:$0xff] %v90
  %114 = vst [vmem:[#allocation3 + $0x8] sm:$0xff] %v93
  %115 = vst [vmem:[#allocation3 + $0x10] sm:$0xff] %v96
  %116 = vst [vmem:[#allocation3 + $0x18] sm:$0xff] %v99
  %117 = vst [vmem:[#allocation3 + $0x20] sm:$0xff] %v102
  %118 = vst [vmem:[#allocation3 + $0x28] sm:$0xff] %v105
  %119 = vst [vmem:[#allocation3 + $0x30] sm:$0xff] %v108
  %120 = vst [vmem:[#allocation3 + $0x38] sm:$0xff] %v111
  %v121 = vld [vmem:[%s2] sm:$0xff]
  %v122 = vld [vmem:[%s2 + $0x8] sm:$0xff]
  %v123 = vld [vmem:[%s2 + $0x10] sm:$0xff]
  %v124 = vld [vmem:[%s2 + $0x18] sm:$0xff]
  %v125 = vld [vmem:[#allocation3] sm:$0xff]
  %vm126 = vcmask 261120
  %v128 = vsel %vm126, 0.0, 0
  %130 = vmatpush.msra.mxu0 0.0
  %131 = vmatpush.msra.mxu0 0.0
  %132 = vmatpush.msra.mxu0 0.0
  %133 = vmatpush.msra.mxu0 0.0
  %134 = vmatpush.msra.mxu0 0.0
  %135 = vmatpush.msra.mxu0 0.0
  %136 = vmatpush.msra.mxu0 0.0
  %137 = vmatpush.msra.mxu0 0.0
  %138 = vmatpush.msra.mxu0 0.0
  %139 = vmatpush.msra.mxu0 0.0
  %140 = vmatpush.msra.mxu0 0.0
  %141 = vmatpush.msra.mxu0 0.0
  %142 = vmatpush.msra.mxu0 %v124
  %143 = vmatpush.msra.mxu0 %v123
  %144 = vmatpush.msra.mxu0 %v122
  %145 = vmatpush.msra.mxu0 %v121
  %146 = vmatmul.f32.gmra.mxu0 %v128
  %v147 = vpop.f32.mrf.mxu0
  %v148 = vadd.f32 0.0, %v147
  %149 = vdwg.mxu0
  %v150 = vadd.f32 %v125, %v148
  %v151 = vmul.f32 %v150, 0.5
  %v152 = vtanh.pop %v151
  %v153 = vadd.f32 %v152, 1.0
  %v154 = vmul.f32 %v153, 0.5
  %v155 = vtanh.pop %v150
  %v156 = vmul.f32 %v154, 0.0
  %158 = vrot.lane.b32.xlu0 %v155, 64
  %v159 = vpop.permute.xlu0 %158
  %v161 = vmul.f32 %v154, %v159
  %163 = vrot.lane.b32.xlu0 %v161, 32
  %v164 = vpop.permute.xlu0 %163
  %v166 = vadd.f32 %v156, %v164
  %v167 = vtanh.pop %v166
  %169 = vrot.lane.b32.xlu0 %v167, 64
  %v170 = vpop.permute.xlu0 %169
  %v172 = vmul.f32 %v154, %v170
  %174 = vrot.lane.b32.xlu0 %v172, 32
  %v175 = vpop.permute.xlu0 %174
  %177 = vst.msk [vmem:[#allocation2] sm:$0xff] %vm126, %v175
  %s178 = scalar_lea.vmem [#allocation3], 8
  %v179 = vld [vmem:[%s178] sm:$0xff]
  %v180 = vsel %vm126, %v175, 0
  %182 = vmatpush.msra.mxu0 0.0
  %183 = vmatpush.msra.mxu0 0.0
  %184 = vmatpush.msra.mxu0 0.0
  %185 = vmatpush.msra.mxu0 0.0
  %186 = vmatpush.msra.mxu0 0.0
  %187 = vmatpush.msra.mxu0 0.0
  %188 = vmatpush.msra.mxu0 0.0
  %189 = vmatpush.msra.mxu0 0.0
  %190 = vmatpush.msra.mxu0 0.0
  %191 = vmatpush.msra.mxu0 0.0
  %192 = vmatpush.msra.mxu0 0.0
  %193 = vmatpush.msra.mxu0 0.0
  %194 = vmatpush.msra.mxu0 %v124
  %195 = vmatpush.msra.mxu0 %v123
  %196 = vmatpush.msra.mxu0 %v122
  %197 = vmatpush.msra.mxu0 %v121
  %198 = vmatmul.f32.gmra.mxu0 %v180
  %v199 = vpop.f32.mrf.mxu0
  %v200 = vadd.f32 0.0, %v199
  %201 = vdwg.mxu0
  %v202 = vadd.f32 %v179, %v200
  %v203 = vmul.f32 %v202, 0.5
  %v204 = vtanh.pop %v203
  %v205 = vadd.f32 %v204, 1.0
  %v206 = vmul.f32 %v205, 0.5
  %v207 = vtanh.pop %v202
  %v208 = vmul.f32 %v206, %v166
  %210 = vrot.lane.b32.xlu0 %v207, 64
  %v211 = vpop.permute.xlu0 %210
  %v213 = vmul.f32 %v206, %v211
  %215 = vrot.lane.b32.xlu0 %v213, 32
  %v216 = vpop.permute.xlu0 %215
  %v218 = vadd.f32 %v208, %v216
  %v219 = vtanh.pop %v218
  %221 = vrot.lane.b32.xlu0 %v219, 64
  %v222 = vpop.permute.xlu0 %221
  %v224 = vmul.f32 %v206, %v222
  %226 = vrot.lane.b32.xlu0 %v224, 32
  %v227 = vpop.permute.xlu0 %226
  %s229 = scalar_lea.vmem [#allocation2], 8
  %230 = vst.msk [vmem:[%s229] sm:$0xff] %vm126, %v227
  %s231 = scalar_lea.vmem [#allocation3], 16
  %v232 = vld [vmem:[%s231] sm:$0xff]
  %v233 = vsel %vm126, %v227, 0
  %235 = vmatpush.msra.mxu0 0.0
  %236 = vmatpush.msra.mxu0 0.0
  %237 = vmatpush.msra.mxu0 0.0
  %238 = vmatpush.msra.mxu0 0.0
  %239 = vmatpush.msra.mxu0 0.0
  %240 = vmatpush.msra.mxu0 0.0
  %241 = vmatpush.msra.mxu0 0.0
  %242 = vmatpush.msra.mxu0 0.0
  %243 = vmatpush.msra.mxu0 0.0
  %244 = vmatpush.msra.mxu0 0.0
  %245 = vmatpush.msra.mxu0 0.0
  %246 = vmatpush.msra.mxu0 0.0
  %247 = vmatpush.msra.mxu0 %v124
  %248 = vmatpush.msra.mxu0 %v123
  %249 = vmatpush.msra.mxu0 %v122
  %250 = vmatpush.msra.mxu0 %v121
  %251 = vmatmul.f32.gmra.mxu0 %v233
  %v252 = vpop.f32.mrf.mxu0
  %v253 = vadd.f32 0.0, %v252
  %254 = vdwg.mxu0
  %v255 = vadd.f32 %v232, %v253
  %v256 = vmul.f32 %v255, 0.5
  %v257 = vtanh.pop %v256
  %v258 = vadd.f32 %v257, 1.0
  %v259 = vmul.f32 %v258, 0.5
  %v260 = vtanh.pop %v255
  %v261 = vmul.f32 %v259, %v218
  %263 = vrot.lane.b32.xlu0 %v260, 64
  %v264 = vpop.permute.xlu0 %263
  %v266 = vmul.f32 %v259, %v264
  %268 = vrot.lane.b32.xlu0 %v266, 32
  %v269 = vpop.permute.xlu0 %268
  %v271 = vadd.f32 %v261, %v269
  %v272 = vtanh.pop %v271
  %274 = vrot.lane.b32.xlu0 %v272, 64
  %v275 = vpop.permute.xlu0 %274
  %v277 = vmul.f32 %v259, %v275
  %279 = vrot.lane.b32.xlu0 %v277, 32
  %v280 = vpop.permute.xlu0 %279
  %s282 = scalar_lea.vmem [#allocation2], 16
  %283 = vst.msk [vmem:[%s282] sm:$0xff] %vm126, %v280
  %s284 = scalar_lea.vmem [#allocation3], 24
  %v285 = vld [vmem:[%s284] sm:$0xff]
  %v286 = vsel %vm126, %v280, 0
  %288 = vmatpush.msra.mxu0 0.0
  %289 = vmatpush.msra.mxu0 0.0
  %290 = vmatpush.msra.mxu0 0.0
  %291 = vmatpush.msra.mxu0 0.0
  %292 = vmatpush.msra.mxu0 0.0
  %293 = vmatpush.msra.mxu0 0.0
  %294 = vmatpush.msra.mxu0 0.0
  %295 = vmatpush.msra.mxu0 0.0
  %296 = vmatpush.msra.mxu0 0.0
  %297 = vmatpush.msra.mxu0 0.0
  %298 = vmatpush.msra.mxu0 0.0
  %299 = vmatpush.msra.mxu0 0.0
  %300 = vmatpush.msra.mxu0 %v124
  %301 = vmatpush.msra.mxu0 %v123
  %302 = vmatpush.msra.mxu0 %v122
  %303 = vmatpush.msra.mxu0 %v121
  %304 = vmatmul.f32.gmra.mxu0 %v286
  %v305 = vpop.f32.mrf.mxu0
  %v306 = vadd.f32 0.0, %v305
  %307 = vdwg.mxu0
  %v308 = vadd.f32 %v285, %v306
  %v309 = vmul.f32 %v308, 0.5
  %v310 = vtanh.pop %v309
  %v311 = vadd.f32 %v310, 1.0
  %v312 = vmul.f32 %v311, 0.5
  %v313 = vtanh.pop %v308
  %v314 = vmul.f32 %v312, %v271
  %316 = vrot.lane.b32.xlu0 %v313, 64
  %v317 = vpop.permute.xlu0 %316
  %v319 = vmul.f32 %v312, %v317
  %321 = vrot.lane.b32.xlu0 %v319, 32
  %v322 = vpop.permute.xlu0 %321
  %v324 = vadd.f32 %v314, %v322
  %v325 = vtanh.pop %v324
  %327 = vrot.lane.b32.xlu0 %v325, 64
  %v328 = vpop.permute.xlu0 %327
  %v330 = vmul.f32 %v312, %v328
  %332 = vrot.lane.b32.xlu0 %v330, 32
  %v333 = vpop.permute.xlu0 %332
  %s335 = scalar_lea.vmem [#allocation2], 24
  %336 = vst.msk [vmem:[%s335] sm:$0xff] %vm126, %v333
  %s337 = scalar_lea.vmem [#allocation3], 32
  %v338 = vld [vmem:[%s337] sm:$0xff]
  %v339 = vsel %vm126, %v333, 0
  %341 = vmatpush.msra.mxu0 0.0
  %342 = vmatpush.msra.mxu0 0.0
  %343 = vmatpush.msra.mxu0 0.0
  %344 = vmatpush.msra.mxu0 0.0
  %345 = vmatpush.msra.mxu0 0.0
  %346 = vmatpush.msra.mxu0 0.0
  %347 = vmatpush.msra.mxu0 0.0
  %348 = vmatpush.msra.mxu0 0.0
  %349 = vmatpush.msra.mxu0 0.0
  %350 = vmatpush.msra.mxu0 0.0
  %351 = vmatpush.msra.mxu0 0.0
  %352 = vmatpush.msra.mxu0 0.0
  %353 = vmatpush.msra.mxu0 %v124
  %354 = vmatpush.msra.mxu0 %v123
  %355 = vmatpush.msra.mxu0 %v122
  %356 = vmatpush.msra.mxu0 %v121
  %357 = vmatmul.f32.gmra.mxu0 %v339
  %v358 = vpop.f32.mrf.mxu0
  %v359 = vadd.f32 0.0, %v358
  %360 = vdwg.mxu0
  %v361 = vadd.f32 %v338, %v359
  %v362 = vmul.f32 %v361, 0.5
  %v363 = vtanh.pop %v362
  %v364 = vadd.f32 %v363, 1.0
  %v365 = vmul.f32 %v364, 0.5
  %v366 = vtanh.pop %v361
  %v367 = vmul.f32 %v365, %v324
  %369 = vrot.lane.b32.xlu0 %v366, 64
  %v370 = vpop.permute.xlu0 %369
  %v372 = vmul.f32 %v365, %v370
  %374 = vrot.lane.b32.xlu0 %v372, 32
  %v375 = vpop.permute.xlu0 %374
  %v377 = vadd.f32 %v367, %v375
  %v378 = vtanh.pop %v377
  %380 = vrot.lane.b32.xlu0 %v378, 64
  %v381 = vpop.permute.xlu0 %380
  %v383 = vmul.f32 %v365, %v381
  %385 = vrot.lane.b32.xlu0 %v383, 32
  %v386 = vpop.permute.xlu0 %385
  %s388 = scalar_lea.vmem [#allocation2], 32
  %389 = vst.msk [vmem:[%s388] sm:$0xff] %vm126, %v386
  %s390 = scalar_lea.vmem [#allocation3], 40
  %v391 = vld [vmem:[%s390] sm:$0xff]
  %v392 = vsel %vm126, %v386, 0
  %394 = vmatpush.msra.mxu0 0.0
  %395 = vmatpush.msra.mxu0 0.0
  %396 = vmatpush.msra.mxu0 0.0
  %397 = vmatpush.msra.mxu0 0.0
  %398 = vmatpush.msra.mxu0 0.0
  %399 = vmatpush.msra.mxu0 0.0
  %400 = vmatpush.msra.mxu0 0.0
  %401 = vmatpush.msra.mxu0 0.0
  %402 = vmatpush.msra.mxu0 0.0
  %403 = vmatpush.msra.mxu0 0.0
  %404 = vmatpush.msra.mxu0 0.0
  %405 = vmatpush.msra.mxu0 0.0
  %406 = vmatpush.msra.mxu0 %v124
  %407 = vmatpush.msra.mxu0 %v123
  %408 = vmatpush.msra.mxu0 %v122
  %409 = vmatpush.msra.mxu0 %v121
  %410 = vmatmul.f32.gmra.mxu0 %v392
  %v411 = vpop.f32.mrf.mxu0
  %v412 = vadd.f32 0.0, %v411
  %413 = vdwg.mxu0
  %v414 = vadd.f32 %v391, %v412
  %v415 = vmul.f32 %v414, 0.5
  %v416 = vtanh.pop %v415
  %v417 = vadd.f32 %v416, 1.0
  %v418 = vmul.f32 %v417, 0.5
  %v419 = vtanh.pop %v414
  %v420 = vmul.f32 %v418, %v377
  %422 = vrot.lane.b32.xlu0 %v419, 64
  %v423 = vpop.permute.xlu0 %422
  %v425 = vmul.f32 %v418, %v423
  %427 = vrot.lane.b32.xlu0 %v425, 32
  %v428 = vpop.permute.xlu0 %427
  %v430 = vadd.f32 %v420, %v428
  %v431 = vtanh.pop %v430
  %433 = vrot.lane.b32.xlu0 %v431, 64
  %v434 = vpop.permute.xlu0 %433
  %v436 = vmul.f32 %v418, %v434
  %438 = vrot.lane.b32.xlu0 %v436, 32
  %v439 = vpop.permute.xlu0 %438
  %s441 = scalar_lea.vmem [#allocation2], 40
  %442 = vst.msk [vmem:[%s441] sm:$0xff] %vm126, %v439
  %s443 = scalar_lea.vmem [#allocation3], 48
  %v444 = vld [vmem:[%s443] sm:$0xff]
  %v445 = vsel %vm126, %v439, 0
  %447 = vmatpush.msra.mxu0 0.0
  %448 = vmatpush.msra.mxu0 0.0
  %449 = vmatpush.msra.mxu0 0.0
  %450 = vmatpush.msra.mxu0 0.0
  %451 = vmatpush.msra.mxu0 0.0
  %452 = vmatpush.msra.mxu0 0.0
  %453 = vmatpush.msra.mxu0 0.0
  %454 = vmatpush.msra.mxu0 0.0
  %455 = vmatpush.msra.mxu0 0.0
  %456 = vmatpush.msra.mxu0 0.0
  %457 = vmatpush.msra.mxu0 0.0
  %458 = vmatpush.msra.mxu0 0.0
  %459 = vmatpush.msra.mxu0 %v124
  %460 = vmatpush.msra.mxu0 %v123
  %461 = vmatpush.msra.mxu0 %v122
  %462 = vmatpush.msra.mxu0 %v121
  %463 = vmatmul.f32.gmra.mxu0 %v445
  %v464 = vpop.f32.mrf.mxu0
  %v465 = vadd.f32 0.0, %v464
  %466 = vdwg.mxu0
  %v467 = vadd.f32 %v444, %v465
  %v468 = vmul.f32 %v467, 0.5
  %v469 = vtanh.pop %v468
  %v470 = vadd.f32 %v469, 1.0
  %v471 = vmul.f32 %v470, 0.5
  %v472 = vtanh.pop %v467
  %v473 = vmul.f32 %v471, %v430
  %475 = vrot.lane.b32.xlu0 %v472, 64
  %v476 = vpop.permute.xlu0 %475
  %v478 = vmul.f32 %v471, %v476
  %480 = vrot.lane.b32.xlu0 %v478, 32
  %v481 = vpop.permute.xlu0 %480
  %v483 = vadd.f32 %v473, %v481
  %v484 = vtanh.pop %v483
  %486 = vrot.lane.b32.xlu0 %v484, 64
  %v487 = vpop.permute.xlu0 %486
  %v489 = vmul.f32 %v471, %v487
  %491 = vrot.lane.b32.xlu0 %v489, 32
  %v492 = vpop.permute.xlu0 %491
  %s494 = scalar_lea.vmem [#allocation2], 48
  %495 = vst.msk [vmem:[%s494] sm:$0xff] %vm126, %v492
  %s496 = scalar_lea.vmem [#allocation3], 56
  %v497 = vld [vmem:[%s496] sm:$0xff]
  %v498 = vsel %vm126, %v492, 0
  %500 = vmatpush.msra.mxu0 0.0
  %501 = vmatpush.msra.mxu0 0.0
  %502 = vmatpush.msra.mxu0 0.0
  %503 = vmatpush.msra.mxu0 0.0
  %504 = vmatpush.msra.mxu0 0.0
  %505 = vmatpush.msra.mxu0 0.0
  %506 = vmatpush.msra.mxu0 0.0
  %507 = vmatpush.msra.mxu0 0.0
  %508 = vmatpush.msra.mxu0 0.0
  %509 = vmatpush.msra.mxu0 0.0
  %510 = vmatpush.msra.mxu0 0.0
  %511 = vmatpush.msra.mxu0 0.0
  %512 = vmatpush.msra.mxu0 %v124
  %513 = vmatpush.msra.mxu0 %v123
  %514 = vmatpush.msra.mxu0 %v122
  %515 = vmatpush.msra.mxu0 %v121
  %516 = vmatmul.f32.gmra.mxu0 %v498
  %v517 = vpop.f32.mrf.mxu0
  %v518 = vadd.f32 0.0, %v517
  %519 = vdwg.mxu0
  %v520 = vadd.f32 %v497, %v518
  %v521 = vmul.f32 %v520, 0.5
  %v522 = vtanh.pop %v521
  %v523 = vadd.f32 %v522, 1.0
  %v524 = vmul.f32 %v523, 0.5
  %v525 = vtanh.pop %v520
  %v526 = vmul.f32 %v524, %v483
  %528 = vrot.lane.b32.xlu0 %v525, 64
  %v529 = vpop.permute.xlu0 %528
  %v531 = vmul.f32 %v524, %v529
  %533 = vrot.lane.b32.xlu0 %v531, 32
  %v534 = vpop.permute.xlu0 %533
  %v536 = vadd.f32 %v526, %v534
  %v537 = vtanh.pop %v536
  %539 = vrot.lane.b32.xlu0 %v537, 64
  %v540 = vpop.permute.xlu0 %539
  %v542 = vmul.f32 %v524, %v540
  %544 = vrot.lane.b32.xlu0 %v542, 32
  %v545 = vpop.permute.xlu0 %544
  %s547 = scalar_lea.vmem [#allocation2], 56
  %548 = vst.msk [vmem:[%s547] sm:$0xff] %vm126, %v545
  %v549 = vld [vmem:[#allocation2] sm:$0xff]
  %v550 = vld [vmem:[#allocation2 + $0x8] sm:$0xff]
  %v551 = vld [vmem:[#allocation2 + $0x10] sm:$0xff]
  %v552 = vld [vmem:[#allocation2 + $0x18] sm:$0xff]
  %v553 = vld [vmem:[#allocation2 + $0x20] sm:$0xff]
  %v554 = vld [vmem:[#allocation2 + $0x28] sm:$0xff]
  %v555 = vld [vmem:[#allocation2 + $0x30] sm:$0xff]
  %v556 = vld [vmem:[#allocation2 + $0x38] sm:$0xff]
  %v557 = vld [vmem:[%s4] sm:$0xff]
  %v558 = vld [vmem:[%s4 + $0x8] sm:$0xff]
  %v559 = vld [vmem:[%s4 + $0x10] sm:$0xff]
  %v560 = vld [vmem:[%s4 + $0x18] sm:$0xff]
  %v561 = vld [vmem:[%s6] sm:$0x1]
  %v563 = vperm.slane %v561, 0
  %v566 = vsel %vm126, %v549, 0
  %v569 = vsel %vm126, %v550, 0
  %v572 = vsel %vm126, %v551, 0
  %v575 = vsel %vm126, %v552, 0
  %v578 = vsel %vm126, %v553, 0
  %v581 = vsel %vm126, %v554, 0
  %v584 = vsel %vm126, %v555, 0
  %v587 = vsel %vm126, %v556, 0
  %589 = vmatpush.msra.mxu0 0.0
  %590 = vmatpush.msra.mxu0 0.0
  %591 = vmatpush.msra.mxu0 0.0
  %592 = vmatpush.msra.mxu0 0.0
  %593 = vmatpush.msra.mxu0 0.0
  %594 = vmatpush.msra.mxu0 0.0
  %595 = vmatpush.msra.mxu0 0.0
  %596 = vmatpush.msra.mxu0 0.0
  %597 = vmatpush.msra.mxu0 0.0
  %598 = vmatpush.msra.mxu0 0.0
  %599 = vmatpush.msra.mxu0 0.0
  %600 = vmatpush.msra.mxu0 0.0
  %601 = vmatpush.msra.mxu0 %v560
  %602 = vmatpush.msra.mxu0 %v559
  %603 = vmatpush.msra.mxu0 %v558
  %604 = vmatpush.msra.mxu0 %v557
  %605 = vmatmul.f32.gmra.mxu0 %v566
  %v606 = vpop.f32.mrf.mxu0
  %v607 = vadd.f32 %v563, %v606
  %608 = vmatmul.f32.gmra.mxu0 %v569
  %v609 = vpop.f32.mrf.mxu0
  %v610 = vadd.f32 %v563, %v609
  %611 = vmatmul.f32.gmra.mxu0 %v572
  %v612 = vpop.f32.mrf.mxu0
  %v613 = vadd.f32 %v563, %v612
  %614 = vmatmul.f32.gmra.mxu0 %v575
  %v615 = vpop.f32.mrf.mxu0
  %v616 = vadd.f32 %v563, %v615
  %617 = vmatmul.f32.gmra.mxu0 %v578
  %v618 = vpop.f32.mrf.mxu0
  %v619 = vadd.f32 %v563, %v618
  %620 = vmatmul.f32.gmra.mxu0 %v581
  %v621 = vpop.f32.mrf.mxu0
  %v622 = vadd.f32 %v563, %v621
  %623 = vmatmul.f32.gmra.mxu0 %v584
  %v624 = vpop.f32.mrf.mxu0
  %v625 = vadd.f32 %v563, %v624
  %626 = vmatmul.f32.gmra.mxu0 %v587
  %v627 = vpop.f32.mrf.mxu0
  %v628 = vadd.f32 %v563, %v627
  %629 = vdwg.mxu0
  %630 = vst [vmem:[#allocation3] sm:$0xff] %v607
  %631 = vst [vmem:[#allocation3 + $0x8] sm:$0xff] %v610
  %632 = vst [vmem:[#allocation3 + $0x10] sm:$0xff] %v613
  %633 = vst [vmem:[#allocation3 + $0x18] sm:$0xff] %v616
  %634 = vst [vmem:[#allocation3 + $0x20] sm:$0xff] %v619
  %635 = vst [vmem:[#allocation3 + $0x28] sm:$0xff] %v622
  %636 = vst [vmem:[#allocation3 + $0x30] sm:$0xff] %v625
  %637 = vst [vmem:[#allocation3 + $0x38] sm:$0xff] %v628
  %v638 = vld [vmem:[%s5] sm:$0xff]
  %v639 = vld [vmem:[%s5 + $0x8] sm:$0xff]
  %v640 = vld [vmem:[%s5 + $0x10] sm:$0xff]
  %v641 = vld [vmem:[%s5 + $0x18] sm:$0xff]
  %v642 = vld [vmem:[#allocation3] sm:$0xff]
  %643 = vmatpush.msra.mxu0 0.0
  %644 = vmatpush.msra.mxu0 0.0
  %645 = vmatpush.msra.mxu0 0.0
  %646 = vmatpush.msra.mxu0 0.0
  %647 = vmatpush.msra.mxu0 0.0
  %648 = vmatpush.msra.mxu0 0.0
  %649 = vmatpush.msra.mxu0 0.0
  %650 = vmatpush.msra.mxu0 0.0
  %651 = vmatpush.msra.mxu0 0.0
  %652 = vmatpush.msra.mxu0 0.0
  %653 = vmatpush.msra.mxu0 0.0
  %654 = vmatpush.msra.mxu0 0.0
  %655 = vmatpush.msra.mxu0 %v641
  %656 = vmatpush.msra.mxu0 %v640
  %657 = vmatpush.msra.mxu0 %v639
  %658 = vmatpush.msra.mxu0 %v638
  %659 = vmatmul.f32.gmra.mxu0 %v128
  %v660 = vpop.f32.mrf.mxu0
  %v661 = vadd.f32 0.0, %v660
  %662 = vdwg.mxu0
  %v663 = vadd.f32 %v642, %v661
  %v664 = vmul.f32 %v663, 0.5
  %v665 = vtanh.pop %v664
  %v666 = vadd.f32 %v665, 1.0
  %v667 = vmul.f32 %v666, 0.5
  %v668 = vtanh.pop %v663
  %v669 = vmul.f32 %v667, 0.0
  %671 = vrot.lane.b32.xlu0 %v668, 64
  %v672 = vpop.permute.xlu0 %671
  %v674 = vmul.f32 %v667, %v672
  %676 = vrot.lane.b32.xlu0 %v674, 32
  %v677 = vpop.permute.xlu0 %676
  %v679 = vadd.f32 %v669, %v677
  %v680 = vtanh.pop %v679
  %682 = vrot.lane.b32.xlu0 %v680, 64
  %v683 = vpop.permute.xlu0 %682
  %v685 = vmul.f32 %v667, %v683
  %v686 = vld [vmem:[%s178] sm:$0xff]
  %688 = vrot.lane.b32.xlu0 %v685, 32
  %v689 = vpop.permute.xlu0 %688
  %v690 = vsel %vm126, %v689, 0
  %692 = vmatpush.msra.mxu0 0.0
  %693 = vmatpush.msra.mxu0 0.0
  %694 = vmatpush.msra.mxu0 0.0
  %695 = vmatpush.msra.mxu0 0.0
  %696 = vmatpush.msra.mxu0 0.0
  %697 = vmatpush.msra.mxu0 0.0
  %698 = vmatpush.msra.mxu0 0.0
  %699 = vmatpush.msra.mxu0 0.0
  %700 = vmatpush.msra.mxu0 0.0
  %701 = vmatpush.msra.mxu0 0.0
  %702 = vmatpush.msra.mxu0 0.0
  %703 = vmatpush.msra.mxu0 0.0
  %704 = vmatpush.msra.mxu0 %v641
  %705 = vmatpush.msra.mxu0 %v640
  %706 = vmatpush.msra.mxu0 %v639
  %707 = vmatpush.msra.mxu0 %v638
  %708 = vmatmul.f32.gmra.mxu0 %v690
  %v709 = vpop.f32.mrf.mxu0
  %v710 = vadd.f32 0.0, %v709
  %711 = vdwg.mxu0
  %v712 = vadd.f32 %v686, %v710
  %v713 = vmul.f32 %v712, 0.5
  %v714 = vtanh.pop %v713
  %v715 = vadd.f32 %v714, 1.0
  %v716 = vmul.f32 %v715, 0.5
  %v717 = vtanh.pop %v712
  %v718 = vmul.f32 %v716, %v679
  %720 = vrot.lane.b32.xlu0 %v717, 64
  %v721 = vpop.permute.xlu0 %720
  %v723 = vmul.f32 %v716, %v721
  %725 = vrot.lane.b32.xlu0 %v723, 32
  %v726 = vpop.permute.xlu0 %725
  %v728 = vadd.f32 %v718, %v726
  %v729 = vtanh.pop %v728
  %731 = vrot.lane.b32.xlu0 %v729, 64
  %v732 = vpop.permute.xlu0 %731
  %v734 = vmul.f32 %v716, %v732
  %v735 = vld [vmem:[%s231] sm:$0xff]
  %737 = vrot.lane.b32.xlu0 %v734, 32
  %v738 = vpop.permute.xlu0 %737
  %v739 = vsel %vm126, %v738, 0
  %741 = vmatpush.msra.mxu0 0.0
  %742 = vmatpush.msra.mxu0 0.0
  %743 = vmatpush.msra.mxu0 0.0
  %744 = vmatpush.msra.mxu0 0.0
  %745 = vmatpush.msra.mxu0 0.0
  %746 = vmatpush.msra.mxu0 0.0
  %747 = vmatpush.msra.mxu0 0.0
  %748 = vmatpush.msra.mxu0 0.0
  %749 = vmatpush.msra.mxu0 0.0
  %750 = vmatpush.msra.mxu0 0.0
  %751 = vmatpush.msra.mxu0 0.0
  %752 = vmatpush.msra.mxu0 0.0
  %753 = vmatpush.msra.mxu0 %v641
  %754 = vmatpush.msra.mxu0 %v640
  %755 = vmatpush.msra.mxu0 %v639
  %756 = vmatpush.msra.mxu0 %v638
  %757 = vmatmul.f32.gmra.mxu0 %v739
  %v758 = vpop.f32.mrf.mxu0
  %v759 = vadd.f32 0.0, %v758
  %760 = vdwg.mxu0
  %v761 = vadd.f32 %v735, %v759
  %v762 = vmul.f32 %v761, 0.5
  %v763 = vtanh.pop %v762
  %v764 = vadd.f32 %v763, 1.0
  %v765 = vmul.f32 %v764, 0.5
  %v766 = vtanh.pop %v761
  %v767 = vmul.f32 %v765, %v728
  %769 = vrot.lane.b32.xlu0 %v766, 64
  %v770 = vpop.permute.xlu0 %769
  %v772 = vmul.f32 %v765, %v770
  %774 = vrot.lane.b32.xlu0 %v772, 32
  %v775 = vpop.permute.xlu0 %774
  %v777 = vadd.f32 %v767, %v775
  %v778 = vtanh.pop %v777
  %780 = vrot.lane.b32.xlu0 %v778, 64
  %v781 = vpop.permute.xlu0 %780
  %v783 = vmul.f32 %v765, %v781
  %v784 = vld [vmem:[%s284] sm:$0xff]
  %786 = vrot.lane.b32.xlu0 %v783, 32
  %v787 = vpop.permute.xlu0 %786
  %v788 = vsel %vm126, %v787, 0
  %790 = vmatpush.msra.mxu0 0.0
  %791 = vmatpush.msra.mxu0 0.0
  %792 = vmatpush.msra.mxu0 0.0
  %793 = vmatpush.msra.mxu0 0.0
  %794 = vmatpush.msra.mxu0 0.0
  %795 = vmatpush.msra.mxu0 0.0
  %796 = vmatpush.msra.mxu0 0.0
  %797 = vmatpush.msra.mxu0 0.0
  %798 = vmatpush.msra.mxu0 0.0
  %799 = vmatpush.msra.mxu0 0.0
  %800 = vmatpush.msra.mxu0 0.0
  %801 = vmatpush.msra.mxu0 0.0
  %802 = vmatpush.msra.mxu0 %v641
  %803 = vmatpush.msra.mxu0 %v640
  %804 = vmatpush.msra.mxu0 %v639
  %805 = vmatpush.msra.mxu0 %v638
  %806 = vmatmul.f32.gmra.mxu0 %v788
  %v807 = vpop.f32.mrf.mxu0
  %v808 = vadd.f32 0.0, %v807
  %809 = vdwg.mxu0
  %v810 = vadd.f32 %v784, %v808
  %v811 = vmul.f32 %v810, 0.5
  %v812 = vtanh.pop %v811
  %v813 = vadd.f32 %v812, 1.0
  %v814 = vmul.f32 %v813, 0.5
  %v815 = vtanh.pop %v810
  %v816 = vmul.f32 %v814, %v777
  %818 = vrot.lane.b32.xlu0 %v815, 64
  %v819 = vpop.permute.xlu0 %818
  %v821 = vmul.f32 %v814, %v819
  %823 = vrot.lane.b32.xlu0 %v821, 32
  %v824 = vpop.permute.xlu0 %823
  %v826 = vadd.f32 %v816, %v824
  %v827 = vtanh.pop %v826
  %829 = vrot.lane.b32.xlu0 %v827, 64
  %v830 = vpop.permute.xlu0 %829
  %v832 = vmul.f32 %v814, %v830
  %v833 = vld [vmem:[%s337] sm:$0xff]
  %835 = vrot.lane.b32.xlu0 %v832, 32
  %v836 = vpop.permute.xlu0 %835
  %v837 = vsel %vm126, %v836, 0
  %839 = vmatpush.msra.mxu0 0.0
  %840 = vmatpush.msra.mxu0 0.0
  %841 = vmatpush.msra.mxu0 0.0
  %842 = vmatpush.msra.mxu0 0.0
  %843 = vmatpush.msra.mxu0 0.0
  %844 = vmatpush.msra.mxu0 0.0
  %845 = vmatpush.msra.mxu0 0.0
  %846 = vmatpush.msra.mxu0 0.0
  %847 = vmatpush.msra.mxu0 0.0
  %848 = vmatpush.msra.mxu0 0.0
  %849 = vmatpush.msra.mxu0 0.0
  %850 = vmatpush.msra.mxu0 0.0
  %851 = vmatpush.msra.mxu0 %v641
  %852 = vmatpush.msra.mxu0 %v640
  %853 = vmatpush.msra.mxu0 %v639
  %854 = vmatpush.msra.mxu0 %v638
  %855 = vmatmul.f32.gmra.mxu0 %v837
  %v856 = vpop.f32.mrf.mxu0
  %v857 = vadd.f32 0.0, %v856
  %858 = vdwg.mxu0
  %v859 = vadd.f32 %v833, %v857
  %v860 = vmul.f32 %v859, 0.5
  %v861 = vtanh.pop %v860
  %v862 = vadd.f32 %v861, 1.0
  %v863 = vmul.f32 %v862, 0.5
  %v864 = vtanh.pop %v859
  %v865 = vmul.f32 %v863, %v826
  %867 = vrot.lane.b32.xlu0 %v864, 64
  %v868 = vpop.permute.xlu0 %867
  %v870 = vmul.f32 %v863, %v868
  %872 = vrot.lane.b32.xlu0 %v870, 32
  %v873 = vpop.permute.xlu0 %872
  %v875 = vadd.f32 %v865, %v873
  %v876 = vtanh.pop %v875
  %878 = vrot.lane.b32.xlu0 %v876, 64
  %v879 = vpop.permute.xlu0 %878
  %v881 = vmul.f32 %v863, %v879
  %v882 = vld [vmem:[%s390] sm:$0xff]
  %884 = vrot.lane.b32.xlu0 %v881, 32
  %v885 = vpop.permute.xlu0 %884
  %v886 = vsel %vm126, %v885, 0
  %888 = vmatpush.msra.mxu0 0.0
  %889 = vmatpush.msra.mxu0 0.0
  %890 = vmatpush.msra.mxu0 0.0
  %891 = vmatpush.msra.mxu0 0.0
  %892 = vmatpush.msra.mxu0 0.0
  %893 = vmatpush.msra.mxu0 0.0
  %894 = vmatpush.msra.mxu0 0.0
  %895 = vmatpush.msra.mxu0 0.0
  %896 = vmatpush.msra.mxu0 0.0
  %897 = vmatpush.msra.mxu0 0.0
  %898 = vmatpush.msra.mxu0 0.0
  %899 = vmatpush.msra.mxu0 0.0
  %900 = vmatpush.msra.mxu0 %v641
  %901 = vmatpush.msra.mxu0 %v640
  %902 = vmatpush.msra.mxu0 %v639
  %903 = vmatpush.msra.mxu0 %v638
  %904 = vmatmul.f32.gmra.mxu0 %v886
  %v905 = vpop.f32.mrf.mxu0
  %v906 = vadd.f32 0.0, %v905
  %907 = vdwg.mxu0
  %v908 = vadd.f32 %v882, %v906
  %v909 = vmul.f32 %v908, 0.5
  %v910 = vtanh.pop %v909
  %v911 = vadd.f32 %v910, 1.0
  %v912 = vmul.f32 %v911, 0.5
  %v913 = vtanh.pop %v908
  %v914 = vmul.f32 %v912, %v875
  %916 = vrot.lane.b32.xlu0 %v913, 64
  %v917 = vpop.permute.xlu0 %916
  %v919 = vmul.f32 %v912, %v917
  %921 = vrot.lane.b32.xlu0 %v919, 32
  %v922 = vpop.permute.xlu0 %921
  %v924 = vadd.f32 %v914, %v922
  %v925 = vtanh.pop %v924
  %927 = vrot.lane.b32.xlu0 %v925, 64
  %v928 = vpop.permute.xlu0 %927
  %v930 = vmul.f32 %v912, %v928
  %v931 = vld [vmem:[%s443] sm:$0xff]
  %933 = vrot.lane.b32.xlu0 %v930, 32
  %v934 = vpop.permute.xlu0 %933
  %v935 = vsel %vm126, %v934, 0
  %937 = vmatpush.msra.mxu0 0.0
  %938 = vmatpush.msra.mxu0 0.0
  %939 = vmatpush.msra.mxu0 0.0
  %940 = vmatpush.msra.mxu0 0.0
  %941 = vmatpush.msra.mxu0 0.0
  %942 = vmatpush.msra.mxu0 0.0
  %943 = vmatpush.msra.mxu0 0.0
  %944 = vmatpush.msra.mxu0 0.0
  %945 = vmatpush.msra.mxu0 0.0
  %946 = vmatpush.msra.mxu0 0.0
  %947 = vmatpush.msra.mxu0 0.0
  %948 = vmatpush.msra.mxu0 0.0
  %949 = vmatpush.msra.mxu0 %v641
  %950 = vmatpush.msra.mxu0 %v640
  %951 = vmatpush.msra.mxu0 %v639
  %952 = vmatpush.msra.mxu0 %v638
  %953 = vmatmul.f32.gmra.mxu0 %v935
  %v954 = vpop.f32.mrf.mxu0
  %v955 = vadd.f32 0.0, %v954
  %956 = vdwg.mxu0
  %v957 = vadd.f32 %v931, %v955
  %v958 = vmul.f32 %v957, 0.5
  %v959 = vtanh.pop %v958
  %v960 = vadd.f32 %v959, 1.0
  %v961 = vmul.f32 %v960, 0.5
  %v962 = vtanh.pop %v957
  %v963 = vmul.f32 %v961, %v924
  %965 = vrot.lane.b32.xlu0 %v962, 64
  %v966 = vpop.permute.xlu0 %965
  %v968 = vmul.f32 %v961, %v966
  %970 = vrot.lane.b32.xlu0 %v968, 32
  %v971 = vpop.permute.xlu0 %970
  %v973 = vadd.f32 %v963, %v971
  %v974 = vtanh.pop %v973
  %976 = vrot.lane.b32.xlu0 %v974, 64
  %v977 = vpop.permute.xlu0 %976
  %v979 = vmul.f32 %v961, %v977
  %v980 = vld [vmem:[%s496] sm:$0xff]
  %982 = vrot.lane.b32.xlu0 %v979, 32
  %v983 = vpop.permute.xlu0 %982
  %v984 = vsel %vm126, %v983, 0
  %986 = vmatpush.msra.mxu0 0.0
  %987 = vmatpush.msra.mxu0 0.0
  %988 = vmatpush.msra.mxu0 0.0
  %989 = vmatpush.msra.mxu0 0.0
  %990 = vmatpush.msra.mxu0 0.0
  %991 = vmatpush.msra.mxu0 0.0
  %992 = vmatpush.msra.mxu0 0.0
  %993 = vmatpush.msra.mxu0 0.0
  %994 = vmatpush.msra.mxu0 0.0
  %995 = vmatpush.msra.mxu0 0.0
  %996 = vmatpush.msra.mxu0 0.0
  %997 = vmatpush.msra.mxu0 0.0
  %998 = vmatpush.msra.mxu0 %v641
  %999 = vmatpush.msra.mxu0 %v640
  %1000 = vmatpush.msra.mxu0 %v639
  %1001 = vmatpush.msra.mxu0 %v638
  %1002 = vmatmul.f32.gmra.mxu0 %v984
  %v1003 = vpop.f32.mrf.mxu0
  %v1004 = vadd.f32 0.0, %v1003
  %1005 = vdwg.mxu0
  %v1006 = vadd.f32 %v980, %v1004
  %v1007 = vmul.f32 %v1006, 0.5
  %v1008 = vtanh.pop %v1007
  %v1009 = vadd.f32 %v1008, 1.0
  %v1010 = vmul.f32 %v1009, 0.5
  %v1011 = vtanh.pop %v1006
  %v1012 = vmul.f32 %v1010, %v973
  %1014 = vrot.lane.b32.xlu0 %v1011, 64
  %v1015 = vpop.permute.xlu0 %1014
  %v1017 = vmul.f32 %v1010, %v1015
  %1019 = vrot.lane.b32.xlu0 %v1017, 32
  %v1020 = vpop.permute.xlu0 %1019
  %v1022 = vadd.f32 %v1012, %v1020
  %v1023 = vtanh.pop %v1022
  %1025 = vrot.lane.b32.xlu0 %v1023, 64
  %v1026 = vpop.permute.xlu0 %1025
  %v1028 = vmul.f32 %v1010, %v1026
  %v1029 = vld [vmem:[%s7] sm:$0xff]
  %v1030 = vld [vmem:[%s7 + $0x8] sm:$0xff]
  %v1031 = vld [vmem:[%s7 + $0x10] sm:$0xff]
  %v1032 = vld [vmem:[%s7 + $0x18] sm:$0xff]
  %v1033 = vld [vmem:[#allocation4] sm:$0x1]
  %v1035 = vperm.slane %v1033, 0
  %1038 = vrot.lane.b32.xlu0 %v1028, 32
  %v1039 = vpop.permute.xlu0 %1038
  %v1040 = vsel %vm126, %v1039, 0
  %1042 = vmatpush.msra.mxu0 0.0
  %1043 = vmatpush.msra.mxu0 0.0
  %1044 = vmatpush.msra.mxu0 0.0
  %1045 = vmatpush.msra.mxu0 0.0
  %1046 = vmatpush.msra.mxu0 0.0
  %1047 = vmatpush.msra.mxu0 0.0
  %1048 = vmatpush.msra.mxu0 0.0
  %1049 = vmatpush.msra.mxu0 0.0
  %1050 = vmatpush.msra.mxu0 0.0
  %1051 = vmatpush.msra.mxu0 0.0
  %1052 = vmatpush.msra.mxu0 0.0
  %1053 = vmatpush.msra.mxu0 0.0
  %1054 = vmatpush.msra.mxu0 %v1032
  %1055 = vmatpush.msra.mxu0 %v1031
  %1056 = vmatpush.msra.mxu0 %v1030
  %1057 = vmatpush.msra.mxu0 %v1029
  %1058 = vmatmul.f32.gmra.mxu0 %v1040
  %v1059 = vpop.f32.mrf.mxu0
  %v1060 = vadd.f32 %v1035, %v1059
  %1061 = vdwg.mxu0
  %vm1062 = vcmask 7168
  %1063 = vst.msk [vmem:[%s9] sm:$0xff] %vm1062, %v1060
  // Predicated region
  $region38: #{lstm_ecf_forward.1} parent=0 // pred_check
    _
  $region39: #{lstm_ecf_forward.1} parent=0 // pred_check_branch
    %1065 = sbr.rel (0) target = $region41
  $region40: #{lstm_ecf_forward.1} parent=0 // pred_region
    _
  $region41: #{lstm_ecf_forward.1} parent=0 // pred_fallthru
    _
  // Predicated region
  $region42: #{lstm_ecf_forward.1} parent=0 // pred_check
    _
  $region43: #{lstm_ecf_forward.1} parent=0 // pred_check_branch
    %1067 = sbr.rel (0) target = $region45
  $region44: #{lstm_ecf_forward.1} parent=0 // pred_region
    _
  $region45: #{lstm_ecf_forward.1} parent=0 // pred_fallthru
    _

</llo_original>
